<compile_context>
chip_gen: v7x
topology: tpu7x:2x2x1
jax: 0.10.0
libtpu: 0.0.40
codegen_flags: <defaults>
</compile_context>

<pallas_src>
import jax
import jax.numpy as jnp
from jax.experimental import pallas as pl
from jax.experimental.pallas import tpu as pltpu


def mlp_kernel(x_ref, w1_ref, b1_ref, w2_ref, b2_ref, w3_ref, b3_ref, o_ref):
    """One batch tile. Batch on the lane (last) axis, features on sublanes.

    x_ref : [d,  tileB] f32   (cast to bf16 in-kernel for the MXU)
    w1_ref: [q1, d]     bf16    b1_ref: [q1, 1] f32
    w2_ref: [q2, q1]    bf16    b2_ref: [q2, 1] f32
    w3_ref: [q2, 1]     f32     b3_ref: [1, 1]  f32
    o_ref : [1,  tileB] f32
    """
    # In-kernel f32 -> bf16 cast of the streamed x tile (no pre-cast HBM copy).
    x = x_ref[...].astype(jnp.bfloat16)

    # Layer 1: ReLU(W1 @ x + b1) -> [q1, tileB]; [q1,1] bias lane-broadcasts.
    h1 = jnp.dot(w1_ref[...], x, preferred_element_type=jnp.float32)
    h1 = jnp.maximum(h1 + b1_ref[...], 0.0)

    # Layer 2: ReLU(W2 @ h1 + b2) -> [q2, tileB]
    h2 = jnp.dot(w2_ref[...], h1.astype(jnp.bfloat16),
                 preferred_element_type=jnp.float32)
    h2 = jnp.maximum(h2 + b2_ref[...], 0.0)

    # Layer 3 (q2 -> 1): VPU multiply + sublane (XLU) reduction instead of an
    # N=1 MXU matmul; sigmoid stays f32 on the EUP (free slot).
    z = jnp.sum(w3_ref[...] * h2, axis=0, keepdims=True) + b3_ref[...]
    o_ref[...] = jax.nn.sigmoid(z)


def neural_net_forward(x, params, *, tile_b=None):
    """x: [B, d] float32. Weights in PyTorch [out, in] layout, biases [out, 1],
    w3 stored as a [q2, 1] column. Returns [B, 1] float32."""
    B, d = x.shape
    q1 = params["w1"].shape[0]
    q2 = params["w2"].shape[0]

    # Tile policy: cover the batch in exactly 2 lane-dense grid steps (128-lane
    # multiples). Two steps keep the parallel axis shardable across v7x's two
    # TensorCores; at these sizes VMEM is never a constraint (<~3 MiB even at
    # tile_b=8192 on any generation).
    if tile_b is None:
        half = -(-B // 2)                       # ceil(B / 2)
        tile_b = min(8192, max(128, -(-half // 128) * 128))
    n_tiles = pl.cdiv(B, tile_b)

    # Single XLA transpose, no pad, no pre-cast: batch goes on the lane axis.
    x_t = x.T                                   # [d, B] f32

    w1 = params["w1"].astype(jnp.bfloat16)
    w2 = params["w2"].astype(jnp.bfloat16)
    b1, b2 = params["b1"], params["b2"]
    w3, b3 = params["w3"], params["b3"]

    # Advisory cost estimate so XLA overlaps surrounding ops with the call.
    flops = int(2 * B * (d * q1 + q1 * q2 + q2) + 4 * B * (q1 + q2 + 1))
    bytes_accessed = int(B * d * 4 + B * 4
                         + (w1.size + w2.size) * 2
                         + (b1.size + b2.size + w3.size + b3.size) * 4)
    cost = pl.CostEstimate(flops=flops, transcendentals=int(B),
                           bytes_accessed=bytes_accessed)

    def build_and_run(single_buffer_weights):
        if single_buffer_weights:
            # Constant index_map -> VMEM-resident; single buffer avoids the
            # redundant second copy / prologue DMA on 6 tiny operands.
            def resident(a):
                return pl.BlockSpec(a.shape, lambda i: (0, 0),
                                    pipeline_mode=pl.Buffered(1))
        else:
            def resident(a):
                return pl.BlockSpec(a.shape, lambda i: (0, 0))

        return pl.pallas_call(
            mlp_kernel,
            out_shape=jax.ShapeDtypeStruct((1, B), jnp.float32),
            grid=(n_tiles,),
            in_specs=[
                pl.BlockSpec((d, tile_b), lambda i: (0, i)),   # x streams per tile
                resident(w1), resident(b1),
                resident(w2), resident(b2),
                resident(w3), resident(b3),
            ],
            out_specs=pl.BlockSpec((1, tile_b), lambda i: (0, i)),
            compiler_params=pltpu.CompilerParams(
                dimension_semantics=("parallel",)),
            cost_estimate=cost,
        )(x_t, w1, b1, w2, b2, w3, b3)

    try:
        out = build_and_run(True)
    except Exception:
        # pipeline_mode=pl.Buffered(1) unsupported in this build: fall back to
        # the default (double-buffered) resident specs — semantics identical.
        out = build_and_run(False)

    # Back to the module's [B, 1] output layout (wrapper-side plumbing only).
    return out.T


def init_params(key, d, q1, q2):
    """PyTorch nn.Linear-style init (uniform +/- 1/sqrt(fan_in)).
    Weights kept in PyTorch [out, in] layout; biases as [out, 1] columns;
    layer-3 weight pre-transposed to a [q2, 1] column."""
    ks = jax.random.split(key, 6)

    def linear(kw, kb, fan_in, fan_out):
        bound = 1.0 / jnp.sqrt(jnp.float32(fan_in))
        w = jax.random.uniform(kw, (fan_out, fan_in), jnp.float32, -bound, bound)
        b = jax.random.uniform(kb, (fan_out, 1), jnp.float32, -bound, bound)
        return w, b

    w1, b1 = linear(ks[0], ks[1], d, q1)
    w2, b2 = linear(ks[2], ks[3], q1, q2)
    w3_row, b3 = linear(ks[4], ks[5], q2, 1)          # [1, q2], [1, 1]
    return {"w1": w1, "b1": b1, "w2": w2, "b2": b2,
            "w3": w3_row.T, "b3": b3}


def reference_forward(x, p):
    h1 = jnp.maximum(x @ p["w1"].T + p["b1"].T, 0.0)
    h2 = jnp.maximum(h1 @ p["w2"].T + p["b2"].T, 0.0)
    return jax.nn.sigmoid(h2 @ p["w3"] + p["b3"])


if __name__ == "__main__":
    key = jax.random.PRNGKey(0)
    k_x, k_p = jax.random.split(key)

    # Small feature dims as the module implies; batch sized so the default
    # tiling gives 2 grid steps of 1024 lanes each (v7x-friendly, low overhead).
    B, d, q1, q2 = 2048, 16, 32, 16
    x = jax.random.normal(k_x, (B, d), dtype=jnp.float32)
    params = init_params(k_p, d, q1, q2)

    out = jax.block_until_ready(neural_net_forward(x, params))
    ref = reference_forward(x, params)

    assert out.shape == (B, 1), out.shape
    # bf16 MXU operands vs f32 reference -> relaxed tolerance.
    err = float(jnp.max(jnp.abs(out - ref)))
    assert jnp.allclose(out, ref, atol=2e-2, rtol=2e-2), f"max abs err {err}"

    print("KERNEL_OK")
</pallas_src>

<mosaic_0001>
module attributes {stable_mosaic.version = 11 : i64} {
  func.func @mlp_kernel(%arg0: i32, %arg1: memref<16x1024xf32, #tpu.memory_space<vmem>>, %arg2: memref<32x16xbf16, #tpu.memory_space<vmem>>, %arg3: memref<32x1xf32, #tpu.memory_space<vmem>>, %arg4: memref<16x32xbf16, #tpu.memory_space<vmem>>, %arg5: memref<16x1xf32, #tpu.memory_space<vmem>>, %arg6: memref<16x1xf32, #tpu.memory_space<vmem>>, %arg7: memref<1x1xf32, #tpu.memory_space<vmem>>, %arg8: memref<1x1024xf32, #tpu.memory_space<vmem>>) attributes {dimension_semantics = [#tpu.dimension_semantics<parallel>], iteration_bounds = array<i64: 2>, scalar_prefetch = 0 : i64, scratch_operands = 0 : i64, tpu.core_type = #tpu.core_type<tc>, window_params = [{transform_indices = @transform_0, window_bounds = array<i64: 16, 1024>}, {pipeline_mode = #tpu.pipeline_mode<synchronous>, transform_indices = @transform_1, window_bounds = array<i64: 32, 16>}, {pipeline_mode = #tpu.pipeline_mode<synchronous>, transform_indices = @transform_2, window_bounds = array<i64: 32, 1>}, {pipeline_mode = #tpu.pipeline_mode<synchronous>, transform_indices = @transform_3, window_bounds = array<i64: 16, 32>}, {pipeline_mode = #tpu.pipeline_mode<synchronous>, transform_indices = @transform_4, window_bounds = array<i64: 16, 1>}, {pipeline_mode = #tpu.pipeline_mode<synchronous>, transform_indices = @transform_5, window_bounds = array<i64: 16, 1>}, {pipeline_mode = #tpu.pipeline_mode<synchronous>, transform_indices = @transform_6, window_bounds = array<i64: 1, 1>}, {transform_indices = @transform_7, window_bounds = array<i64: 1, 1024>}]} {
    %c0 = arith.constant 0 : index
    %c0_0 = arith.constant 0 : index
    %0 = vector.load %arg1[%c0, %c0_0] : memref<16x1024xf32, #tpu.memory_space<vmem>>, vector<16x1024xf32>
    %1 = arith.truncf %0 : vector<16x1024xf32> to vector<16x1024xbf16>
    %c0_1 = arith.constant 0 : index
    %c0_2 = arith.constant 0 : index
    %2 = vector.load %arg2[%c0_1, %c0_2] : memref<32x16xbf16, #tpu.memory_space<vmem>>, vector<32x16xbf16>
    %cst = arith.constant dense<0.000000e+00> : vector<32x1024xf32>
    %3 = tpu.matmul %2, %1, %cst {dimension_numbers = #tpu.dot_dimension_numbers<[1], [0], [0], [1], [0, 0, 1, 1], [], []>} : vector<32x16xbf16>, vector<16x1024xbf16>, vector<32x1024xf32> -> vector<32x1024xf32>
    %c0_3 = arith.constant 0 : index
    %c0_4 = arith.constant 0 : index
    %4 = vector.load %arg3[%c0_3, %c0_4] : memref<32x1xf32, #tpu.memory_space<vmem>>, vector<32x1xf32>
    %5 = vector.broadcast %4 : vector<32x1xf32> to vector<32x1024xf32>
    %6 = arith.addf %3, %5 : vector<32x1024xf32>
    %cst_5 = arith.constant 0.000000e+00 : f32
    %7 = vector.broadcast %cst_5 : f32 to vector<32x1024xf32>
    %8 = arith.maximumf %6, %7 : vector<32x1024xf32>
    %c0_6 = arith.constant 0 : index
    %c0_7 = arith.constant 0 : index
    %9 = vector.load %arg4[%c0_6, %c0_7] : memref<16x32xbf16, #tpu.memory_space<vmem>>, vector<16x32xbf16>
    %10 = arith.truncf %8 : vector<32x1024xf32> to vector<32x1024xbf16>
    %cst_8 = arith.constant dense<0.000000e+00> : vector<16x1024xf32>
    %11 = tpu.matmul %9, %10, %cst_8 {dimension_numbers = #tpu.dot_dimension_numbers<[1], [0], [0], [1], [0, 0, 1, 1], [], []>} : vector<16x32xbf16>, vector<32x1024xbf16>, vector<16x1024xf32> -> vector<16x1024xf32>
    %c0_9 = arith.constant 0 : index
    %c0_10 = arith.constant 0 : index
    %12 = vector.load %arg5[%c0_9, %c0_10] : memref<16x1xf32, #tpu.memory_space<vmem>>, vector<16x1xf32>
    %13 = vector.broadcast %12 : vector<16x1xf32> to vector<16x1024xf32>
    %14 = arith.addf %11, %13 : vector<16x1024xf32>
    %cst_11 = arith.constant 0.000000e+00 : f32
    %15 = vector.broadcast %cst_11 : f32 to vector<16x1024xf32>
    %16 = arith.maximumf %14, %15 : vector<16x1024xf32>
    %c0_12 = arith.constant 0 : index
    %c0_13 = arith.constant 0 : index
    %17 = vector.load %arg6[%c0_12, %c0_13] : memref<16x1xf32, #tpu.memory_space<vmem>>, vector<16x1xf32>
    %18 = vector.broadcast %17 : vector<16x1xf32> to vector<16x1024xf32>
    %19 = arith.mulf %18, %16 : vector<16x1024xf32>
    %cst_14 = arith.constant dense<0.000000e+00> : vector<1024xf32>
    %20 = vector.multi_reduction <add>, %19, %cst_14 [0] : vector<16x1024xf32> to vector<1024xf32>
    %21 = vector.shape_cast %20 : vector<1024xf32> to vector<1x1024xf32>
    %c0_15 = arith.constant 0 : index
    %c0_16 = arith.constant 0 : index
    %22 = vector.load %arg7[%c0_15, %c0_16] : memref<1x1xf32, #tpu.memory_space<vmem>>, vector<1x1xf32>
    %23 = vector.broadcast %22 : vector<1x1xf32> to vector<1x1024xf32>
    %24 = arith.addf %21, %23 : vector<1x1024xf32>
    %25 = arith.negf %24 : vector<1x1024xf32>
    %26 = math.exp %25 : vector<1x1024xf32>
    %cst_17 = arith.constant 1.000000e+00 : f32
    %27 = vector.broadcast %cst_17 : f32 to vector<1x1024xf32>
    %28 = arith.addf %27, %26 : vector<1x1024xf32>
    %29 = arith.divf %27, %28 : vector<1x1024xf32>
    %c0_18 = arith.constant 0 : index
    %c0_19 = arith.constant 0 : index
    %30 = vector.load %arg8[%c0_18, %c0_19] : memref<1x1024xf32, #tpu.memory_space<vmem>>, vector<1x1024xf32>
    tpu.vector_store %arg8[%c0_18, %c0_19], %29 {strides = array<i32>} : memref<1x1024xf32, #tpu.memory_space<vmem>>, vector<1x1024xf32>,
    return
  }
  func.func @transform_0(%arg0: i32) -> (i32, i32) {
    %c0_i32 = arith.constant 0 : i32
    %c0_i32_0 = arith.constant 0 : i32
    return %c0_i32, %arg0 : i32, i32
  }
  func.func @transform_1(%arg0: i32) -> (i32, i32) {
    %c0_i32 = arith.constant 0 : i32
    %c0_i32_0 = arith.constant 0 : i32
    %c0_i32_1 = arith.constant 0 : i32
    return %c0_i32, %c0_i32_0 : i32, i32
  }
  func.func @transform_2(%arg0: i32) -> (i32, i32) {
    %c0_i32 = arith.constant 0 : i32
    %c0_i32_0 = arith.constant 0 : i32
    %c0_i32_1 = arith.constant 0 : i32
    return %c0_i32, %c0_i32_0 : i32, i32
  }
  func.func @transform_3(%arg0: i32) -> (i32, i32) {
    %c0_i32 = arith.constant 0 : i32
    %c0_i32_0 = arith.constant 0 : i32
    %c0_i32_1 = arith.constant 0 : i32
    return %c0_i32, %c0_i32_0 : i32, i32
  }
  func.func @transform_4(%arg0: i32) -> (i32, i32) {
    %c0_i32 = arith.constant 0 : i32
    %c0_i32_0 = arith.constant 0 : i32
    %c0_i32_1 = arith.constant 0 : i32
    return %c0_i32, %c0_i32_0 : i32, i32
  }
  func.func @transform_5(%arg0: i32) -> (i32, i32) {
    %c0_i32 = arith.constant 0 : i32
    %c0_i32_0 = arith.constant 0 : i32
    %c0_i32_1 = arith.constant 0 : i32
    return %c0_i32, %c0_i32_0 : i32, i32
  }
  func.func @transform_6(%arg0: i32) -> (i32, i32) {
    %c0_i32 = arith.constant 0 : i32
    %c0_i32_0 = arith.constant 0 : i32
    %c0_i32_1 = arith.constant 0 : i32
    return %c0_i32, %c0_i32_0 : i32, i32
  }
  func.func @transform_7(%arg0: i32) -> (i32, i32) {
    %c0_i32 = arith.constant 0 : i32
    %c0_i32_0 = arith.constant 0 : i32
    return %c0_i32, %arg0 : i32, i32
  }
}

module attributes {stable_mosaic.version = 11 : i64} {
  func.func @mlp_kernel(%arg0: i32, %arg1: memref<16x1024xf32, #tpu.memory_space<vmem>>, %arg2: memref<32x16xbf16, #tpu.memory_space<vmem>>, %arg3: memref<32x1xf32, #tpu.memory_space<vmem>>, %arg4: memref<16x32xbf16, #tpu.memory_space<vmem>>, %arg5: memref<16x1xf32, #tpu.memory_space<vmem>>, %arg6: memref<16x1xf32, #tpu.memory_space<vmem>>, %arg7: memref<1x1xf32, #tpu.memory_space<vmem>>, %arg8: memref<1x1024xf32, #tpu.memory_space<vmem>>) attributes {dimension_semantics = [#tpu.dimension_semantics<parallel>], iteration_bounds = array<i64: 2>, scalar_prefetch = 0 : i64, scratch_operands = 0 : i64, tpu.core_type = #tpu.core_type<tc>, window_params = [{transform_indices = @transform_0, window_bounds = array<i64: 16, 1024>}, {pipeline_mode = #tpu.pipeline_mode<synchronous>, transform_indices = @transform_1, window_bounds = array<i64: 32, 16>}, {pipeline_mode = #tpu.pipeline_mode<synchronous>, transform_indices = @transform_2, window_bounds = array<i64: 32, 1>}, {pipeline_mode = #tpu.pipeline_mode<synchronous>, transform_indices = @transform_3, window_bounds = array<i64: 16, 32>}, {pipeline_mode = #tpu.pipeline_mode<synchronous>, transform_indices = @transform_4, window_bounds = array<i64: 16, 1>}, {pipeline_mode = #tpu.pipeline_mode<synchronous>, transform_indices = @transform_5, window_bounds = array<i64: 16, 1>}, {pipeline_mode = #tpu.pipeline_mode<synchronous>, transform_indices = @transform_6, window_bounds = array<i64: 1, 1>}, {transform_indices = @transform_7, window_bounds = array<i64: 1, 1024>}]} {
    %c0 = arith.constant 0 : index
    %c0_0 = arith.constant 0 : index
    %0 = vector.load %arg1[%c0, %c0_0] : memref<16x1024xf32, #tpu.memory_space<vmem>>, vector<16x1024xf32>
    %1 = arith.truncf %0 : vector<16x1024xf32> to vector<16x1024xbf16>
    %c0_1 = arith.constant 0 : index
    %c0_2 = arith.constant 0 : index
    %2 = vector.load %arg2[%c0_1, %c0_2] : memref<32x16xbf16, #tpu.memory_space<vmem>>, vector<32x16xbf16>
    %cst = arith.constant dense<0.000000e+00> : vector<32x1024xf32>
    %3 = tpu.matmul %2, %1, %cst {dimension_numbers = #tpu.dot_dimension_numbers<[1], [0], [0], [1], [0, 0, 1, 1], [], []>} : vector<32x16xbf16>, vector<16x1024xbf16>, vector<32x1024xf32> -> vector<32x1024xf32>
    %c0_3 = arith.constant 0 : index
    %c0_4 = arith.constant 0 : index
    %4 = vector.load %arg3[%c0_3, %c0_4] : memref<32x1xf32, #tpu.memory_space<vmem>>, vector<32x1xf32>
    %5 = vector.broadcast %4 : vector<32x1xf32> to vector<32x1024xf32>
    %6 = arith.addf %3, %5 : vector<32x1024xf32>
    %cst_5 = arith.constant 0.000000e+00 : f32
    %7 = vector.broadcast %cst_5 : f32 to vector<32x1024xf32>
    %8 = arith.maximumf %6, %7 : vector<32x1024xf32>
    %c0_6 = arith.constant 0 : index
    %c0_7 = arith.constant 0 : index
    %9 = vector.load %arg4[%c0_6, %c0_7] : memref<16x32xbf16, #tpu.memory_space<vmem>>, vector<16x32xbf16>
    %10 = arith.truncf %8 : vector<32x1024xf32> to vector<32x1024xbf16>
    %cst_8 = arith.constant dense<0.000000e+00> : vector<16x1024xf32>
    %11 = tpu.matmul %9, %10, %cst_8 {dimension_numbers = #tpu.dot_dimension_numbers<[1], [0], [0], [1], [0, 0, 1, 1], [], []>} : vector<16x32xbf16>, vector<32x1024xbf16>, vector<16x1024xf32> -> vector<16x1024xf32>
    %c0_9 = arith.constant 0 : index
    %c0_10 = arith.constant 0 : index
    %12 = vector.load %arg5[%c0_9, %c0_10] : memref<16x1xf32, #tpu.memory_space<vmem>>, vector<16x1xf32>
    %13 = vector.broadcast %12 : vector<16x1xf32> to vector<16x1024xf32>
    %14 = arith.addf %11, %13 : vector<16x1024xf32>
    %cst_11 = arith.constant 0.000000e+00 : f32
    %15 = vector.broadcast %cst_11 : f32 to vector<16x1024xf32>
    %16 = arith.maximumf %14, %15 : vector<16x1024xf32>
    %c0_12 = arith.constant 0 : index
    %c0_13 = arith.constant 0 : index
    %17 = vector.load %arg6[%c0_12, %c0_13] : memref<16x1xf32, #tpu.memory_space<vmem>>, vector<16x1xf32>
    %18 = vector.broadcast %17 : vector<16x1xf32> to vector<16x1024xf32>
    %19 = arith.mulf %18, %16 : vector<16x1024xf32>
    %cst_14 = arith.constant dense<0.000000e+00> : vector<1024xf32>
    %20 = vector.multi_reduction <add>, %19, %cst_14 [0] : vector<16x1024xf32> to vector<1024xf32>
    %21 = vector.shape_cast %20 : vector<1024xf32> to vector<1x1024xf32>
    %c0_15 = arith.constant 0 : index
    %c0_16 = arith.constant 0 : index
    %22 = vector.load %arg7[%c0_15, %c0_16] : memref<1x1xf32, #tpu.memory_space<vmem>>, vector<1x1xf32>
    %23 = vector.broadcast %22 : vector<1x1xf32> to vector<1x1024xf32>
    %24 = arith.addf %21, %23 : vector<1x1024xf32>
    %25 = arith.negf %24 : vector<1x1024xf32>
    %26 = math.exp %25 : vector<1x1024xf32>
    %cst_17 = arith.constant 1.000000e+00 : f32
    %27 = vector.broadcast %cst_17 : f32 to vector<1x1024xf32>
    %28 = arith.addf %27, %26 : vector<1x1024xf32>
    %29 = arith.divf %27, %28 : vector<1x1024xf32>
    %c0_18 = arith.constant 0 : index
    %c0_19 = arith.constant 0 : index
    %30 = vector.load %arg8[%c0_18, %c0_19] : memref<1x1024xf32, #tpu.memory_space<vmem>>, vector<1x1024xf32>
    tpu.vector_store %arg8[%c0_18, %c0_19], %29 {strides = array<i32>} : memref<1x1024xf32, #tpu.memory_space<vmem>>, vector<1x1024xf32>,
    return
  }
  func.func @transform_0(%arg0: i32) -> (i32, i32) {
    %c0_i32 = arith.constant 0 : i32
    %c0_i32_0 = arith.constant 0 : i32
    return %c0_i32, %arg0 : i32, i32
  }
  func.func @transform_1(%arg0: i32) -> (i32, i32) {
    %c0_i32 = arith.constant 0 : i32
    %c0_i32_0 = arith.constant 0 : i32
    %c0_i32_1 = arith.constant 0 : i32
    return %c0_i32, %c0_i32_0 : i32, i32
  }
  func.func @transform_2(%arg0: i32) -> (i32, i32) {
    %c0_i32 = arith.constant 0 : i32
    %c0_i32_0 = arith.constant 0 : i32
    %c0_i32_1 = arith.constant 0 : i32
    return %c0_i32, %c0_i32_0 : i32, i32
  }
  func.func @transform_3(%arg0: i32) -> (i32, i32) {
    %c0_i32 = arith.constant 0 : i32
    %c0_i32_0 = arith.constant 0 : i32
    %c0_i32_1 = arith.constant 0 : i32
    return %c0_i32, %c0_i32_0 : i32, i32
  }
  func.func @transform_4(%arg0: i32) -> (i32, i32) {
    %c0_i32 = arith.constant 0 : i32
    %c0_i32_0 = arith.constant 0 : i32
    %c0_i32_1 = arith.constant 0 : i32
    return %c0_i32, %c0_i32_0 : i32, i32
  }
  func.func @transform_5(%arg0: i32) -> (i32, i32) {
    %c0_i32 = arith.constant 0 : i32
    %c0_i32_0 = arith.constant 0 : i32
    %c0_i32_1 = arith.constant 0 : i32
    return %c0_i32, %c0_i32_0 : i32, i32
  }
  func.func @transform_6(%arg0: i32) -> (i32, i32) {
    %c0_i32 = arith.constant 0 : i32
    %c0_i32_0 = arith.constant 0 : i32
    %c0_i32_1 = arith.constant 0 : i32
    return %c0_i32, %c0_i32_0 : i32, i32
  }
  func.func @transform_7(%arg0: i32) -> (i32, i32) {
    %c0_i32 = arith.constant 0 : i32
    %c0_i32_0 = arith.constant 0 : i32
    return %c0_i32, %arg0 : i32, i32
  }
}

</mosaic_0001>

<llo_original>
// kernel: tpu_custom_call.1
$region0: #{tpu_custom_call.1}
  #allocation0 [shape = 'u32[]', space=smem, size = 0x4, offset = 0x4, fixed_abs, tag = 'smem constant byte address 0x4 - core index']
  #allocation1 [shape = 'u32[144,128]{1,0:T(1,128)}', space=vmem, size = 0x12000, scoped, tag = 'internal scratch']
  #allocation2 [shape = 'f32[1,1]{1,0:T(1,128)S(1)}', space=vmem, size = 0x200, scoped, tag = 'scoped memory for tpu_custom_call.1']
  %s0 = inlined_call_operand.hbm [shape: f32[16,2048], index: 0, kind: input, shape index: {}]
  %s1 = inlined_call_operand.vmem [shape: bf16[32,16], index: 1, kind: input, shape index: {}]
  %s2 = inlined_call_operand.vmem [shape: f32[32,1], index: 2, kind: input, shape index: {}]
  %s3 = inlined_call_operand.vmem [shape: bf16[16,32], index: 3, kind: input, shape index: {}]
  %s4 = inlined_call_operand.vmem [shape: f32[16,1], index: 4, kind: input, shape index: {}]
  %s5 = inlined_call_operand.vmem [shape: f32[16,1], index: 5, kind: input, shape index: {}]
  %s6 = inlined_call_operand.<no memory space> [shape: f32[1,1], index: 6, kind: input, shape index: {}]
  %s7 = inlined_call_operand.hbm [shape: f32[1,2048], index: 7, kind: output, shape index: {}]
  %s8 = sld [smem:[#allocation0]]
  $region65: #{tpu_custom_call.1} parent=0
    _
  %s10 = ssub.s32 1, %s8
  %s11 = scalar_select 0, %s10, %s8
  %v12 = vstv %s6
  %13 = vst [vmem:[#allocation2] sm:$0x1] %v12
  $region1: #{tpu_custom_call.1} parent=0
    #allocation3 [shape = 'u8[131072]{0}', space=vmem, size = 0x20000, scoped, tag = 'input window, operand 0']
    #allocation4 [shape = 's32[2]{0}', space=sflag, size = 0x8, scoped, tag = 'scoped memory for tpu_custom_call.1']
    #allocation5 [shape = 's32[2]{0}', space=sflag, size = 0x8, scoped, tag = 'scoped memory for tpu_custom_call.1']
    #allocation6 [shape = 'u8[8192]{0}', space=vmem, size = 0x2000, scoped, tag = 'output window, operand 0']
    %14 = vsyncpa [#allocation4], 0
    %s15 = scalar_lea.sflag [#allocation4], 1
    %16 = vsyncpa %s15, 0
    %17 = vsyncpa [#allocation5], 0
    %s18 = scalar_lea.sflag [#allocation5], 1
    %19 = vsyncpa %s18, 0
    loop: start=0, step=1, limit=4
    $region2: #{tpu_custom_call.1} parent=1 // loop_pre_header
      _
    $region3: #{tpu_custom_call.1} parent=1 // loop_header
      %s21 = sphi 0, %s25
      %p22 = scmp.ge.s32.totalorder %s21, 4
      %s31 = sphi 0, %s33
      %s34 = sphi 0, %s31
      %s35 = sphi 0, %s34
      %s51 = sphi 0, %s35
      %s55 = sphi 0, %s55
      %s57 = sphi 0, %s55
      %s58 = sphi 0, %s57
      %s72 = sphi 0, %s58
      %s76 = sphi 0, %s76
      %s78 = sphi 0, %s76
      %s79 = sphi 0, %s78
      %s93 = sphi 0, %s79
      %s97 = sphi 0, %s97
      %s99 = sphi 0, %s97
      %s100 = sphi 0, %s99
      %s114 = sphi 0, %s100
      %s118 = sphi 0, %s118
      %s120 = sphi 0, %s118
      %s121 = sphi 0, %s120
      %s135 = sphi 0, %s121
      %s139 = sphi 0, %s139
      %s141 = sphi 0, %s139
      %s142 = sphi 0, %s141
      %s156 = sphi 0, %s142
      %s160 = sphi 0, %s160
      %s162 = sphi 0, %s160
      %s163 = sphi 0, %s162
      %s177 = sphi 0, %s163
      %s183 = sphi 0, %s185
      %s186 = sphi 0, %s183
      %s187 = sphi 0, %s186
      %s203 = sphi 0, %s187
    $region4: #{tpu_custom_call.1} parent=1 // loop_header_branch
      %24 = sbr.rel (%p22) target = $region8
    $region5: #{tpu_custom_call.1} parent=1 // loop_body
      %s26 = ssub.s32 %s21, 1
      %s27 = ssub.s32 %s21, 2
      %s28 = sadd.s32 %s21, 1
      %s29 = ssub.s32 %s21, %s28
      %p30 = scmp.eq.s32.totalorder %s29, 0
      %s32 = sadd.s32 %s31, 1
      %s33 = scalar_select %p30, %s31, %s32
      %p36 = pneg %p30
      %p37 = scmp.eq.s32.totalorder %s21, 1
      %p38 = por %p36, %p37
      %p39 = scmp.ne.s32.totalorder %s31, %s34
      %p40 = scmp.eq.s32.totalorder %s21, 0
      %p41 = por %p39, %p40
      %p42 = scmp.ne.s32.totalorder %s31, %s34
      %p43 = scmp.eq.s32.totalorder %s26, 1
      %p44 = por %p42, %p43
      %p45 = scmp.ne.s32.totalorder %s34, %s35
      %p46 = scmp.eq.s32.totalorder %s26, 0
      %p47 = por %p45, %p46
      %p48 = scmp.ne.s32.totalorder %s34, %s35
      %p49 = scmp.eq.s32.totalorder %s27, 1
      %p50 = por %p48, %p49
      %p52 = scmp.ne.s32.totalorder %s35, %s51
      %p53 = scmp.eq.s32.totalorder %s27, 0
      %p54 = por %p52, %p53
      %s56 = sadd.s32 %s55, 1
      %p59 = scmp.eq.s32.totalorder %s21, 1
      %p60 = scmp.ne.s32.totalorder %s55, %s57
      %p61 = scmp.eq.s32.totalorder %s21, 0
      %p62 = por %p60, %p61
      %p63 = scmp.ne.s32.totalorder %s55, %s57
      %p64 = scmp.eq.s32.totalorder %s26, 1
      %p65 = por %p63, %p64
      %p66 = scmp.ne.s32.totalorder %s57, %s58
      %p67 = scmp.eq.s32.totalorder %s26, 0
      %p68 = por %p66, %p67
      %p69 = scmp.ne.s32.totalorder %s57, %s58
      %p70 = scmp.eq.s32.totalorder %s27, 1
      %p71 = por %p69, %p70
      %p73 = scmp.ne.s32.totalorder %s58, %s72
      %p74 = scmp.eq.s32.totalorder %s27, 0
      %p75 = por %p73, %p74
      %s77 = sadd.s32 %s76, 1
      %p80 = scmp.eq.s32.totalorder %s21, 1
      %p81 = scmp.ne.s32.totalorder %s76, %s78
      %p82 = scmp.eq.s32.totalorder %s21, 0
      %p83 = por %p81, %p82
      %p84 = scmp.ne.s32.totalorder %s76, %s78
      %p85 = scmp.eq.s32.totalorder %s26, 1
      %p86 = por %p84, %p85
      %p87 = scmp.ne.s32.totalorder %s78, %s79
      %p88 = scmp.eq.s32.totalorder %s26, 0
      %p89 = por %p87, %p88
      %p90 = scmp.ne.s32.totalorder %s78, %s79
      %p91 = scmp.eq.s32.totalorder %s27, 1
      %p92 = por %p90, %p91
      %p94 = scmp.ne.s32.totalorder %s79, %s93
      %p95 = scmp.eq.s32.totalorder %s27, 0
      %p96 = por %p94, %p95
      %s98 = sadd.s32 %s97, 1
      %p101 = scmp.eq.s32.totalorder %s21, 1
      %p102 = scmp.ne.s32.totalorder %s97, %s99
      %p103 = scmp.eq.s32.totalorder %s21, 0
      %p104 = por %p102, %p103
      %p105 = scmp.ne.s32.totalorder %s97, %s99
      %p106 = scmp.eq.s32.totalorder %s26, 1
      %p107 = por %p105, %p106
      %p108 = scmp.ne.s32.totalorder %s99, %s100
      %p109 = scmp.eq.s32.totalorder %s26, 0
      %p110 = por %p108, %p109
      %p111 = scmp.ne.s32.totalorder %s99, %s100
      %p112 = scmp.eq.s32.totalorder %s27, 1
      %p113 = por %p111, %p112
      %p115 = scmp.ne.s32.totalorder %s100, %s114
      %p116 = scmp.eq.s32.totalorder %s27, 0
      %p117 = por %p115, %p116
      %s119 = sadd.s32 %s118, 1
      %p122 = scmp.eq.s32.totalorder %s21, 1
      %p123 = scmp.ne.s32.totalorder %s118, %s120
      %p124 = scmp.eq.s32.totalorder %s21, 0
      %p125 = por %p123, %p124
      %p126 = scmp.ne.s32.totalorder %s118, %s120
      %p127 = scmp.eq.s32.totalorder %s26, 1
      %p128 = por %p126, %p127
      %p129 = scmp.ne.s32.totalorder %s120, %s121
      %p130 = scmp.eq.s32.totalorder %s26, 0
      %p131 = por %p129, %p130
      %p132 = scmp.ne.s32.totalorder %s120, %s121
      %p133 = scmp.eq.s32.totalorder %s27, 1
      %p134 = por %p132, %p133
      %p136 = scmp.ne.s32.totalorder %s121, %s135
      %p137 = scmp.eq.s32.totalorder %s27, 0
      %p138 = por %p136, %p137
      %s140 = sadd.s32 %s139, 1
      %p143 = scmp.eq.s32.totalorder %s21, 1
      %p144 = scmp.ne.s32.totalorder %s139, %s141
      %p145 = scmp.eq.s32.totalorder %s21, 0
      %p146 = por %p144, %p145
      %p147 = scmp.ne.s32.totalorder %s139, %s141
      %p148 = scmp.eq.s32.totalorder %s26, 1
      %p149 = por %p147, %p148
      %p150 = scmp.ne.s32.totalorder %s141, %s142
      %p151 = scmp.eq.s32.totalorder %s26, 0
      %p152 = por %p150, %p151
      %p153 = scmp.ne.s32.totalorder %s141, %s142
      %p154 = scmp.eq.s32.totalorder %s27, 1
      %p155 = por %p153, %p154
      %p157 = scmp.ne.s32.totalorder %s142, %s156
      %p158 = scmp.eq.s32.totalorder %s27, 0
      %p159 = por %p157, %p158
      %s161 = sadd.s32 %s160, 1
      %p164 = scmp.eq.s32.totalorder %s21, 1
      %p165 = scmp.ne.s32.totalorder %s160, %s162
      %p166 = scmp.eq.s32.totalorder %s21, 0
      %p167 = por %p165, %p166
      %p168 = scmp.ne.s32.totalorder %s160, %s162
      %p169 = scmp.eq.s32.totalorder %s26, 1
      %p170 = por %p168, %p169
      %p171 = scmp.ne.s32.totalorder %s162, %s163
      %p172 = scmp.eq.s32.totalorder %s26, 0
      %p173 = por %p171, %p172
      %p174 = scmp.ne.s32.totalorder %s162, %s163
      %p175 = scmp.eq.s32.totalorder %s27, 1
      %p176 = por %p174, %p175
      %p178 = scmp.ne.s32.totalorder %s163, %s177
      %p179 = scmp.eq.s32.totalorder %s27, 0
      %p180 = por %p178, %p179
      %s181 = ssub.s32 %s21, %s28
      %p182 = scmp.eq.s32.totalorder %s181, 0
      %s184 = sadd.s32 %s183, 1
      %s185 = scalar_select %p182, %s183, %s184
      %p188 = pneg %p182
      %p189 = scmp.eq.s32.totalorder %s21, 1
      %p190 = por %p188, %p189
      %p191 = scmp.ne.s32.totalorder %s183, %s186
      %p192 = scmp.eq.s32.totalorder %s21, 0
      %p193 = por %p191, %p192
      %p194 = scmp.ne.s32.totalorder %s183, %s186
      %p195 = scmp.eq.s32.totalorder %s26, 1
      %p196 = por %p194, %p195
      %p197 = scmp.ne.s32.totalorder %s186, %s187
      %p198 = scmp.eq.s32.totalorder %s26, 0
      %p199 = por %p197, %p198
      %p200 = scmp.ne.s32.totalorder %s186, %s187
      %p201 = scmp.eq.s32.totalorder %s27, 1
      %p202 = por %p200, %p201
      %p204 = scmp.ne.s32.totalorder %s187, %s203
      %p205 = scmp.eq.s32.totalorder %s27, 0
      %p206 = por %p204, %p205
      %p207 = scmp.le.s32.totalorder 1, %s21
      %p208 = scmp.lt.s32.totalorder %s21, 3
      %p209 = pnand %p207, %p208
      %p210 = pneg %p209
      // Predicated region
      $region9: #{tpu_custom_call.1} parent=5 // pred_check
        _
      $region10: #{tpu_custom_call.1} parent=5 // pred_check_branch
        %212 = sbr.rel (%p209) target = $region12
      $region11: #{tpu_custom_call.1} parent=5 // pred_region
        %s213 = ssub.s32 %s21, 1
        // Predicated region
        $region13: #{tpu_custom_call.1} parent=11 // pred_check
          %p214 = pneg %p68
        $region14: #{tpu_custom_call.1} parent=11 // pred_check_branch
          %216 = sbr.rel (%p214) target = $region16
        $region15: #{tpu_custom_call.1} parent=11 // pred_region
          _
        $region16: #{tpu_custom_call.1} parent=11 // pred_fallthru
          _
        // Predicated region
        $region17: #{tpu_custom_call.1} parent=11 // pred_check
          %p217 = pneg %p89
        $region18: #{tpu_custom_call.1} parent=11 // pred_check_branch
          %219 = sbr.rel (%p217) target = $region20
        $region19: #{tpu_custom_call.1} parent=11 // pred_region
          _
        $region20: #{tpu_custom_call.1} parent=11 // pred_fallthru
          _
        // Predicated region
        $region21: #{tpu_custom_call.1} parent=11 // pred_check
          %p220 = pneg %p110
        $region22: #{tpu_custom_call.1} parent=11 // pred_check_branch
          %222 = sbr.rel (%p220) target = $region24
        $region23: #{tpu_custom_call.1} parent=11 // pred_region
          _
        $region24: #{tpu_custom_call.1} parent=11 // pred_fallthru
          _
        // Predicated region
        $region25: #{tpu_custom_call.1} parent=11 // pred_check
          %p223 = pneg %p131
        $region26: #{tpu_custom_call.1} parent=11 // pred_check_branch
          %225 = sbr.rel (%p223) target = $region28
        $region27: #{tpu_custom_call.1} parent=11 // pred_region
          _
        $region28: #{tpu_custom_call.1} parent=11 // pred_fallthru
          _
        // Predicated region
        $region29: #{tpu_custom_call.1} parent=11 // pred_check
          %p226 = pneg %p152
        $region30: #{tpu_custom_call.1} parent=11 // pred_check_branch
          %228 = sbr.rel (%p226) target = $region32
        $region31: #{tpu_custom_call.1} parent=11 // pred_region
          _
        $region32: #{tpu_custom_call.1} parent=11 // pred_fallthru
          _
        // Predicated region
        $region33: #{tpu_custom_call.1} parent=11 // pred_check
          %p229 = pneg %p173
        $region34: #{tpu_custom_call.1} parent=11 // pred_check_branch
          %231 = sbr.rel (%p229) target = $region36
        $region35: #{tpu_custom_call.1} parent=11 // pred_region
          _
        $region36: #{tpu_custom_call.1} parent=11 // pred_fallthru
          _
      $region12: #{tpu_custom_call.1} parent=5 // pred_fallthru
        _
      %p232 = scmp.lt.s32.totalorder %s21, 2
      // Predicated region
      $region37: #{tpu_custom_call.1} parent=5 // pred_check
        %p233 = pneg %p232
      $region38: #{tpu_custom_call.1} parent=5 // pred_check_branch
        %235 = sbr.rel (%p233) target = $region40
      $region39: #{tpu_custom_call.1} parent=5 // pred_region
        // Predicated region
        $region41: #{tpu_custom_call.1} parent=39 // pred_check
          %p236 = pneg %p41
        $region42: #{tpu_custom_call.1} parent=39 // pred_check_branch
          %238 = sbr.rel (%p236) target = $region44
        $region43: #{tpu_custom_call.1} parent=39 // pred_region
          %s239 = sand.u32 %s31, 1
          %s240 = scalar_lea.sflag [#allocation4], %s239
          %s241 = sand.u32 %s31, 1
          %s242 = smul.addr %s241, 128
          %s243 = scalar_lea.vmem [#allocation3], %s242
          %s244 = smul.u32 8, %s21
          %s246 = ssub.s32 2048, 2048
          %247 = vsyncadd %s240, %s246
          %s248 = smul.addr %s244, 128
          %s249 = scalar_lea.hbm %s0, %s248
          %s250 = sshll.u32 %s243, 4
          %s251 = int_to_ptr.vmem [resolvable:$true] %s250
          %256 = dma.hbm_to_vmem [thread:$0]  %s249, 2048, %s251, %s240, 2048, 1024, 64
        $region44: #{tpu_custom_call.1} parent=39 // pred_fallthru
          _
      $region40: #{tpu_custom_call.1} parent=5 // pred_fallthru
        _
      %p257 = scmp.le.s32.totalorder 1, %s21
      %p258 = scmp.lt.s32.totalorder %s21, 3
      %p259 = pnand %p257, %p258
      %p260 = pneg %p259
      // Predicated region
      $region45: #{tpu_custom_call.1} parent=5 // pred_check
        _
      $region46: #{tpu_custom_call.1} parent=5 // pred_check_branch
        %262 = sbr.rel (%p259) target = $region48
      $region47: #{tpu_custom_call.1} parent=5 // pred_region
        %s263 = ssub.s32 %s21, 1
        %s264 = sand.u32 %s34, 1
        %s265 = scalar_lea.sflag [#allocation4], %s264
        %s266 = sand.u32 %s34, 1
        %s267 = smul.addr %s266, 128
        %s268 = scalar_lea.vmem [#allocation3], %s267
        // Predicated region
        $region49: #{tpu_custom_call.1} parent=47 // pred_check
          %p269 = pneg %p47
        $region50: #{tpu_custom_call.1} parent=47 // pred_check_branch
          %271 = sbr.rel (%p269) target = $region52
        $region51: #{tpu_custom_call.1} parent=47 // pred_region
          %272 = dma.done %s265, 2048
        $region52: #{tpu_custom_call.1} parent=47 // pred_fallthru
          _
        %s273 = sand.u32 %s34, 1
        %s274 = scalar_lea.sflag [#allocation4], %s273
        %s275 = sand.u32 %s34, 1
        %s276 = smul.addr %s275, 128
        %s277 = scalar_lea.vmem [#allocation3], %s276
        %p278 = pneg %p47
        %p279 = pneg %p44
        %p280 = pneg %p68
        %p281 = pneg %p65
        %p282 = pneg %p89
        %p283 = pneg %p86
        %p284 = pneg %p110
        %p285 = pneg %p107
        %p286 = pneg %p131
        %p287 = pneg %p128
        %p288 = pneg %p152
        %p289 = pneg %p149
        %p290 = pneg %p173
        %p291 = pneg %p170
        %p292 = pneg %p199
        %p293 = pneg %p196
        %s294 = sand.u32 %s186, 1
        %s295 = scalar_lea.sflag [#allocation5], %s294
        %s296 = sand.u32 %s186, 1
        %s297 = smul.addr %s296, 8
        %s298 = scalar_lea.vmem [#allocation6], %s297
        %s299 = smul.u32 8, %s26
        %s300 = smul.u32 8, %s26
        %v302 = vld [vmem:[%s268] sm:$0xff]
        %v303 = vld [vmem:[%s268 + $0x8] sm:$0xff]
        %v304 = vld [vmem:[%s268 + $0x10] sm:$0xff]
        %v305 = vld [vmem:[%s268 + $0x18] sm:$0xff]
        %v306 = vld [vmem:[%s268 + $0x20] sm:$0xff]
        %v307 = vld [vmem:[%s268 + $0x28] sm:$0xff]
        %v308 = vld [vmem:[%s268 + $0x30] sm:$0xff]
        %v309 = vld [vmem:[%s268 + $0x38] sm:$0xff]
        %v310 = vld [vmem:[%s268 + $0x40] sm:$0xff]
        %v311 = vld [vmem:[%s268 + $0x48] sm:$0xff]
        %v312 = vld [vmem:[%s268 + $0x50] sm:$0xff]
        %v313 = vld [vmem:[%s268 + $0x58] sm:$0xff]
        %v314 = vld [vmem:[%s268 + $0x60] sm:$0xff]
        %v315 = vld [vmem:[%s268 + $0x68] sm:$0xff]
        %v316 = vld [vmem:[%s268 + $0x70] sm:$0xff]
        %v317 = vld [vmem:[%s268 + $0x78] sm:$0xff]
        %v318 = vpack.c.bf16 %v310, %v302
        %v319 = vpack.c.bf16 %v311, %v303
        %v320 = vpack.c.bf16 %v312, %v304
        %v321 = vpack.c.bf16 %v313, %v305
        %v322 = vpack.c.bf16 %v314, %v306
        %v323 = vpack.c.bf16 %v315, %v307
        %v324 = vpack.c.bf16 %v316, %v308
        %v325 = vpack.c.bf16 %v317, %v309
        %v326 = vld [vmem:[%s1] sm:$0xf]
        %v327 = vld [vmem:[%s1 + $0x4] sm:$0xf]
        %v328 = vld [vmem:[%s1 + $0x8] sm:$0xf]
        %v329 = vld [vmem:[%s1 + $0xc] sm:$0xf]
        %v330 = vld [vmem:[%s2] sm:$0xff]
        %v331 = vld [vmem:[%s2 + $0x8] sm:$0xff]
        %v332 = vld [vmem:[%s2 + $0x10] sm:$0xff]
        %v333 = vld [vmem:[%s2 + $0x18] sm:$0xff]
        %335 = vset.pattern.permute.xlu0 0
        %336 = vperm.xlu0 %335, %v330
        %v337 = vpop.permute.xlu0 %336
        %340 = vset.pattern.permute.xlu0 0
        %341 = vperm.xlu0 %340, %v331
        %v342 = vpop.permute.xlu0 %341
        %345 = vset.pattern.permute.xlu0 0
        %346 = vperm.xlu0 %345, %v332
        %v347 = vpop.permute.xlu0 %346
        %350 = vset.pattern.permute.xlu0 0
        %351 = vperm.xlu0 %350, %v333
        %v352 = vpop.permute.xlu0 %351
        %v358 = vunpack.c.l.b16 %v326
        %v359 = vunpack.c.l.b16 %v327
        %v360 = vunpack.c.l.b16 %v328
        %v361 = vunpack.c.l.b16 %v329
        %v362 = vpack.c.b16 %v359, %v358
        %v363 = vpack.c.b16 %v361, %v360
        %vm364 = vcmask 130048
        %v366 = vsel %vm364, %v362, 0
        %v369 = vsel %vm364, %v363, 0
        %371 = vmatprep.subr.bf16.mxu0 %v319
        %372 = vmatpush1.bf16.msra.mxu0 %v318
        %373 = vmatprep.subr.bf16.mxu0 0
        %374 = vmatpush1.bf16.msra.mxu0 0
        %375 = vmatprep.subr.bf16.mxu0 0
        %376 = vmatpush1.bf16.msra.mxu0 0
        %377 = vmatprep.subr.bf16.mxu0 0
        %378 = vmatpush1.bf16.msra.mxu0 0
        %379 = vmatprep.subr.bf16.mxu0 0
        %380 = vmatpush1.bf16.msra.mxu0 0
        %381 = vmatprep.subr.bf16.mxu0 0
        %382 = vmatpush1.bf16.msra.mxu0 0
        %383 = vmatprep.subr.bf16.mxu0 0
        %384 = vmatpush1.bf16.msra.mxu0 0
        %385 = vmatprep.subr.bf16.mxu0 0
        %386 = vmatpush1.bf16.msra.mxu0 0
        %387 = vmatprep.subr.bf16.mxu0 0
        %388 = vmatpush1.bf16.msra.mxu0 0
        %389 = vmatprep.subr.bf16.mxu0 0
        %390 = vmatpush1.bf16.msra.mxu0 0
        %391 = vmatprep.subr.bf16.mxu0 0
        %392 = vmatpush1.bf16.msra.mxu0 0
        %393 = vmatprep.subr.bf16.mxu0 0
        %394 = vmatpush1.bf16.msra.mxu0 0
        %395 = vmatprep.subr.bf16.mxu0 0
        %396 = vmatpush1.bf16.msra.mxu0 0
        %397 = vmatprep.subr.bf16.mxu0 0
        %398 = vmatpush1.bf16.msra.mxu0 0
        %399 = vmatprep.subr.bf16.mxu0 0
        %400 = vmatpush1.bf16.msra.mxu0 0
        %401 = vmatprep.subr.bf16.mxu0 0
        %402 = vmatpush1.bf16.msra.mxu0 0
        %403 = vmatprep.mubr.bf16.mxu0 0
        %404 = vmatmul.mubr.bf16.gmra.mrb[0].mxu0 %v366
        %v405 = vpop.f32.mrb[0].mxu0
        %v406 = vadd.f32 %v337, %v405
        %v407 = vpop.f32.mrb[0].mxu0
        %v408 = vadd.f32 %v337, %v407
        %v409 = vpop.f32.mrb[0].mxu0
        %v410 = vadd.f32 %v342, %v409
        %v411 = vpop.f32.mrb[0].mxu0
        %v412 = vadd.f32 %v342, %v411
        %413 = vmatprep.mubr.bf16.mxu0 0
        %414 = vmatmul.mubr.bf16.gmra.mrb[0].mxu0 %v369
        %v415 = vpop.f32.mrb[0].mxu0
        %v416 = vadd.f32 %v347, %v415
        %v417 = vpop.f32.mrb[0].mxu0
        %v418 = vadd.f32 %v347, %v417
        %v419 = vpop.f32.mrb[0].mxu0
        %v420 = vadd.f32 %v352, %v419
        %v421 = vpop.f32.mrb[0].mxu0
        %v422 = vadd.f32 %v352, %v421
        %423 = vdwg.mxu0
        %424 = vmatprep.subr.bf16.mxu0 %v321
        %425 = vmatpush1.bf16.msra.mxu0 %v320
        %426 = vmatprep.subr.bf16.mxu0 0
        %427 = vmatpush1.bf16.msra.mxu0 0
        %428 = vmatprep.subr.bf16.mxu0 0
        %429 = vmatpush1.bf16.msra.mxu0 0
        %430 = vmatprep.subr.bf16.mxu0 0
        %431 = vmatpush1.bf16.msra.mxu0 0
        %432 = vmatprep.subr.bf16.mxu0 0
        %433 = vmatpush1.bf16.msra.mxu0 0
        %434 = vmatprep.subr.bf16.mxu0 0
        %435 = vmatpush1.bf16.msra.mxu0 0
        %436 = vmatprep.subr.bf16.mxu0 0
        %437 = vmatpush1.bf16.msra.mxu0 0
        %438 = vmatprep.subr.bf16.mxu0 0
        %439 = vmatpush1.bf16.msra.mxu0 0
        %440 = vmatprep.subr.bf16.mxu0 0
        %441 = vmatpush1.bf16.msra.mxu0 0
        %442 = vmatprep.subr.bf16.mxu0 0
        %443 = vmatpush1.bf16.msra.mxu0 0
        %444 = vmatprep.subr.bf16.mxu0 0
        %445 = vmatpush1.bf16.msra.mxu0 0
        %446 = vmatprep.subr.bf16.mxu0 0
        %447 = vmatpush1.bf16.msra.mxu0 0
        %448 = vmatprep.subr.bf16.mxu0 0
        %449 = vmatpush1.bf16.msra.mxu0 0
        %450 = vmatprep.subr.bf16.mxu0 0
        %451 = vmatpush1.bf16.msra.mxu0 0
        %452 = vmatprep.subr.bf16.mxu0 0
        %453 = vmatpush1.bf16.msra.mxu0 0
        %454 = vmatprep.subr.bf16.mxu0 0
        %455 = vmatpush1.bf16.msra.mxu0 0
        %456 = vmatprep.mubr.bf16.mxu0 0
        %457 = vmatmul.mubr.bf16.gmra.mrb[0].mxu0 %v366
        %v458 = vpop.f32.mrb[0].mxu0
        %v459 = vadd.f32 %v337, %v458
        %v460 = vpop.f32.mrb[0].mxu0
        %v461 = vadd.f32 %v337, %v460
        %v462 = vpop.f32.mrb[0].mxu0
        %v463 = vadd.f32 %v342, %v462
        %v464 = vpop.f32.mrb[0].mxu0
        %v465 = vadd.f32 %v342, %v464
        %466 = vmatprep.mubr.bf16.mxu0 0
        %467 = vmatmul.mubr.bf16.gmra.mrb[0].mxu0 %v369
        %v468 = vpop.f32.mrb[0].mxu0
        %v469 = vadd.f32 %v347, %v468
        %v470 = vpop.f32.mrb[0].mxu0
        %v471 = vadd.f32 %v347, %v470
        %v472 = vpop.f32.mrb[0].mxu0
        %v473 = vadd.f32 %v352, %v472
        %v474 = vpop.f32.mrb[0].mxu0
        %v475 = vadd.f32 %v352, %v474
        %476 = vdwg.mxu0
        %477 = vmatprep.subr.bf16.mxu0 %v323
        %478 = vmatpush1.bf16.msra.mxu0 %v322
        %479 = vmatprep.subr.bf16.mxu0 0
        %480 = vmatpush1.bf16.msra.mxu0 0
        %481 = vmatprep.subr.bf16.mxu0 0
        %482 = vmatpush1.bf16.msra.mxu0 0
        %483 = vmatprep.subr.bf16.mxu0 0
        %484 = vmatpush1.bf16.msra.mxu0 0
        %485 = vmatprep.subr.bf16.mxu0 0
        %486 = vmatpush1.bf16.msra.mxu0 0
        %487 = vmatprep.subr.bf16.mxu0 0
        %488 = vmatpush1.bf16.msra.mxu0 0
        %489 = vmatprep.subr.bf16.mxu0 0
        %490 = vmatpush1.bf16.msra.mxu0 0
        %491 = vmatprep.subr.bf16.mxu0 0
        %492 = vmatpush1.bf16.msra.mxu0 0
        %493 = vmatprep.subr.bf16.mxu0 0
        %494 = vmatpush1.bf16.msra.mxu0 0
        %495 = vmatprep.subr.bf16.mxu0 0
        %496 = vmatpush1.bf16.msra.mxu0 0
        %497 = vmatprep.subr.bf16.mxu0 0
        %498 = vmatpush1.bf16.msra.mxu0 0
        %499 = vmatprep.subr.bf16.mxu0 0
        %500 = vmatpush1.bf16.msra.mxu0 0
        %501 = vmatprep.subr.bf16.mxu0 0
        %502 = vmatpush1.bf16.msra.mxu0 0
        %503 = vmatprep.subr.bf16.mxu0 0
        %504 = vmatpush1.bf16.msra.mxu0 0
        %505 = vmatprep.subr.bf16.mxu0 0
        %506 = vmatpush1.bf16.msra.mxu0 0
        %507 = vmatprep.subr.bf16.mxu0 0
        %508 = vmatpush1.bf16.msra.mxu0 0
        %509 = vmatprep.mubr.bf16.mxu0 0
        %510 = vmatmul.mubr.bf16.gmra.mrb[0].mxu0 %v366
        %v511 = vpop.f32.mrb[0].mxu0
        %v512 = vadd.f32 %v337, %v511
        %v513 = vpop.f32.mrb[0].mxu0
        %v514 = vadd.f32 %v337, %v513
        %v515 = vpop.f32.mrb[0].mxu0
        %v516 = vadd.f32 %v342, %v515
        %v517 = vpop.f32.mrb[0].mxu0
        %v518 = vadd.f32 %v342, %v517
        %519 = vmatprep.mubr.bf16.mxu0 0
        %520 = vmatmul.mubr.bf16.gmra.mrb[0].mxu0 %v369
        %v521 = vpop.f32.mrb[0].mxu0
        %v522 = vadd.f32 %v347, %v521
        %v523 = vpop.f32.mrb[0].mxu0
        %v524 = vadd.f32 %v347, %v523
        %v525 = vpop.f32.mrb[0].mxu0
        %v526 = vadd.f32 %v352, %v525
        %v527 = vpop.f32.mrb[0].mxu0
        %v528 = vadd.f32 %v352, %v527
        %529 = vdwg.mxu0
        %530 = vmatprep.subr.bf16.mxu0 %v325
        %531 = vmatpush1.bf16.msra.mxu0 %v324
        %532 = vmatprep.subr.bf16.mxu0 0
        %533 = vmatpush1.bf16.msra.mxu0 0
        %534 = vmatprep.subr.bf16.mxu0 0
        %535 = vmatpush1.bf16.msra.mxu0 0
        %536 = vmatprep.subr.bf16.mxu0 0
        %537 = vmatpush1.bf16.msra.mxu0 0
        %538 = vmatprep.subr.bf16.mxu0 0
        %539 = vmatpush1.bf16.msra.mxu0 0
        %540 = vmatprep.subr.bf16.mxu0 0
        %541 = vmatpush1.bf16.msra.mxu0 0
        %542 = vmatprep.subr.bf16.mxu0 0
        %543 = vmatpush1.bf16.msra.mxu0 0
        %544 = vmatprep.subr.bf16.mxu0 0
        %545 = vmatpush1.bf16.msra.mxu0 0
        %546 = vmatprep.subr.bf16.mxu0 0
        %547 = vmatpush1.bf16.msra.mxu0 0
        %548 = vmatprep.subr.bf16.mxu0 0
        %549 = vmatpush1.bf16.msra.mxu0 0
        %550 = vmatprep.subr.bf16.mxu0 0
        %551 = vmatpush1.bf16.msra.mxu0 0
        %552 = vmatprep.subr.bf16.mxu0 0
        %553 = vmatpush1.bf16.msra.mxu0 0
        %554 = vmatprep.subr.bf16.mxu0 0
        %555 = vmatpush1.bf16.msra.mxu0 0
        %556 = vmatprep.subr.bf16.mxu0 0
        %557 = vmatpush1.bf16.msra.mxu0 0
        %558 = vmatprep.subr.bf16.mxu0 0
        %559 = vmatpush1.bf16.msra.mxu0 0
        %560 = vmatprep.subr.bf16.mxu0 0
        %561 = vmatpush1.bf16.msra.mxu0 0
        %562 = vmatprep.mubr.bf16.mxu0 0
        %563 = vmatmul.mubr.bf16.gmra.mrb[0].mxu0 %v366
        %v564 = vpop.f32.mrb[0].mxu0
        %v565 = vadd.f32 %v337, %v564
        %v566 = vpop.f32.mrb[0].mxu0
        %v567 = vadd.f32 %v337, %v566
        %v568 = vpop.f32.mrb[0].mxu0
        %v569 = vadd.f32 %v342, %v568
        %v570 = vpop.f32.mrb[0].mxu0
        %v571 = vadd.f32 %v342, %v570
        %572 = vmatprep.mubr.bf16.mxu0 0
        %573 = vmatmul.mubr.bf16.gmra.mrb[0].mxu0 %v369
        %v574 = vpop.f32.mrb[0].mxu0
        %v575 = vadd.f32 %v347, %v574
        %v576 = vpop.f32.mrb[0].mxu0
        %v577 = vadd.f32 %v347, %v576
        %v578 = vpop.f32.mrb[0].mxu0
        %v579 = vadd.f32 %v352, %v578
        %v580 = vpop.f32.mrb[0].mxu0
        %v581 = vadd.f32 %v352, %v580
        %582 = vdwg.mxu0
        %v583 = vmax.f32 %v406, 0.0
        %v584 = vmax.f32 %v408, 0.0
        %v585 = vmax.f32 %v459, 0.0
        %v586 = vmax.f32 %v461, 0.0
        %v587 = vmax.f32 %v512, 0.0
        %v588 = vmax.f32 %v514, 0.0
        %v589 = vmax.f32 %v565, 0.0
        %v590 = vmax.f32 %v567, 0.0
        %v591 = vmax.f32 %v410, 0.0
        %v592 = vmax.f32 %v412, 0.0
        %v593 = vmax.f32 %v463, 0.0
        %v594 = vmax.f32 %v465, 0.0
        %v595 = vmax.f32 %v516, 0.0
        %v596 = vmax.f32 %v518, 0.0
        %v597 = vmax.f32 %v569, 0.0
        %v598 = vmax.f32 %v571, 0.0
        %v599 = vmax.f32 %v416, 0.0
        %v600 = vmax.f32 %v418, 0.0
        %v601 = vmax.f32 %v469, 0.0
        %v602 = vmax.f32 %v471, 0.0
        %v603 = vmax.f32 %v522, 0.0
        %v604 = vmax.f32 %v524, 0.0
        %v605 = vmax.f32 %v575, 0.0
        %v606 = vmax.f32 %v577, 0.0
        %v607 = vmax.f32 %v420, 0.0
        %v608 = vmax.f32 %v422, 0.0
        %v609 = vmax.f32 %v473, 0.0
        %v610 = vmax.f32 %v475, 0.0
        %v611 = vmax.f32 %v526, 0.0
        %v612 = vmax.f32 %v528, 0.0
        %v613 = vmax.f32 %v579, 0.0
        %v614 = vmax.f32 %v581, 0.0
        %v615 = vld [vmem:[%s3] sm:$0xf]
        %v616 = vld [vmem:[%s3 + $0x4] sm:$0xf]
        %v617 = vpack.c.bf16 %v591, %v583
        %v618 = vpack.c.bf16 %v592, %v584
        %v619 = vpack.c.bf16 %v593, %v585
        %v620 = vpack.c.bf16 %v594, %v586
        %v621 = vpack.c.bf16 %v595, %v587
        %v622 = vpack.c.bf16 %v596, %v588
        %v623 = vpack.c.bf16 %v597, %v589
        %v624 = vpack.c.bf16 %v598, %v590
        %v625 = vpack.c.bf16 %v607, %v599
        %v626 = vpack.c.bf16 %v608, %v600
        %v627 = vpack.c.bf16 %v609, %v601
        %v628 = vpack.c.bf16 %v610, %v602
        %v629 = vpack.c.bf16 %v611, %v603
        %v630 = vpack.c.bf16 %v612, %v604
        %v631 = vpack.c.bf16 %v613, %v605
        %v632 = vpack.c.bf16 %v614, %v606
        %v633 = vld [vmem:[%s4] sm:$0xff]
        %v634 = vld [vmem:[%s4 + $0x8] sm:$0xff]
        %636 = vset.pattern.permute.xlu0 0
        %637 = vperm.xlu0 %636, %v633
        %v638 = vpop.permute.xlu0 %637
        %641 = vset.pattern.permute.xlu0 0
        %642 = vperm.xlu0 %641, %v634
        %v643 = vpop.permute.xlu0 %642
        %v647 = vunpack.c.l.b16 %v615
        %v648 = vunpack.c.l.b16 %v616
        %v649 = vpack.c.b16 %v648, %v647
        %vm650 = vcmask 261120
        %v652 = vsel %vm650, %v649, 0
        %654 = vmatprep.subr.bf16.mxu0 %v618
        %655 = vmatpush1.bf16.msra.mxu0 %v617
        %656 = vmatprep.subr.bf16.mxu0 %v626
        %657 = vmatpush1.bf16.msra.mxu0 %v625
        %658 = vmatprep.subr.bf16.mxu0 0
        %659 = vmatpush1.bf16.msra.mxu0 0
        %660 = vmatprep.subr.bf16.mxu0 0
        %661 = vmatpush1.bf16.msra.mxu0 0
        %662 = vmatprep.subr.bf16.mxu0 0
        %663 = vmatpush1.bf16.msra.mxu0 0
        %664 = vmatprep.subr.bf16.mxu0 0
        %665 = vmatpush1.bf16.msra.mxu0 0
        %666 = vmatprep.subr.bf16.mxu0 0
        %667 = vmatpush1.bf16.msra.mxu0 0
        %668 = vmatprep.subr.bf16.mxu0 0
        %669 = vmatpush1.bf16.msra.mxu0 0
        %670 = vmatprep.subr.bf16.mxu0 0
        %671 = vmatpush1.bf16.msra.mxu0 0
        %672 = vmatprep.subr.bf16.mxu0 0
        %673 = vmatpush1.bf16.msra.mxu0 0
        %674 = vmatprep.subr.bf16.mxu0 0
        %675 = vmatpush1.bf16.msra.mxu0 0
        %676 = vmatprep.subr.bf16.mxu0 0
        %677 = vmatpush1.bf16.msra.mxu0 0
        %678 = vmatprep.subr.bf16.mxu0 0
        %679 = vmatpush1.bf16.msra.mxu0 0
        %680 = vmatprep.subr.bf16.mxu0 0
        %681 = vmatpush1.bf16.msra.mxu0 0
        %682 = vmatprep.subr.bf16.mxu0 0
        %683 = vmatpush1.bf16.msra.mxu0 0
        %684 = vmatprep.subr.bf16.mxu0 0
        %685 = vmatpush1.bf16.msra.mxu0 0
        %686 = vmatprep.mubr.bf16.mxu0 0
        %687 = vmatmul.mubr.bf16.gmra.mrb[0].mxu0 %v652
        %v688 = vpop.f32.mrb[0].mxu0
        %v689 = vadd.f32 %v638, %v688
        %v690 = vpop.f32.mrb[0].mxu0
        %v691 = vadd.f32 %v638, %v690
        %v692 = vpop.f32.mrb[0].mxu0
        %v693 = vadd.f32 %v643, %v692
        %v694 = vpop.f32.mrb[0].mxu0
        %v695 = vadd.f32 %v643, %v694
        %696 = vdwg.mxu0
        %697 = vmatprep.subr.bf16.mxu0 %v620
        %698 = vmatpush1.bf16.msra.mxu0 %v619
        %699 = vmatprep.subr.bf16.mxu0 %v628
        %700 = vmatpush1.bf16.msra.mxu0 %v627
        %701 = vmatprep.subr.bf16.mxu0 0
        %702 = vmatpush1.bf16.msra.mxu0 0
        %703 = vmatprep.subr.bf16.mxu0 0
        %704 = vmatpush1.bf16.msra.mxu0 0
        %705 = vmatprep.subr.bf16.mxu0 0
        %706 = vmatpush1.bf16.msra.mxu0 0
        %707 = vmatprep.subr.bf16.mxu0 0
        %708 = vmatpush1.bf16.msra.mxu0 0
        %709 = vmatprep.subr.bf16.mxu0 0
        %710 = vmatpush1.bf16.msra.mxu0 0
        %711 = vmatprep.subr.bf16.mxu0 0
        %712 = vmatpush1.bf16.msra.mxu0 0
        %713 = vmatprep.subr.bf16.mxu0 0
        %714 = vmatpush1.bf16.msra.mxu0 0
        %715 = vmatprep.subr.bf16.mxu0 0
        %716 = vmatpush1.bf16.msra.mxu0 0
        %717 = vmatprep.subr.bf16.mxu0 0
        %718 = vmatpush1.bf16.msra.mxu0 0
        %719 = vmatprep.subr.bf16.mxu0 0
        %720 = vmatpush1.bf16.msra.mxu0 0
        %721 = vmatprep.subr.bf16.mxu0 0
        %722 = vmatpush1.bf16.msra.mxu0 0
        %723 = vmatprep.subr.bf16.mxu0 0
        %724 = vmatpush1.bf16.msra.mxu0 0
        %725 = vmatprep.subr.bf16.mxu0 0
        %726 = vmatpush1.bf16.msra.mxu0 0
        %727 = vmatprep.subr.bf16.mxu0 0
        %728 = vmatpush1.bf16.msra.mxu0 0
        %729 = vmatprep.mubr.bf16.mxu0 0
        %730 = vmatmul.mubr.bf16.gmra.mrb[0].mxu0 %v652
        %v731 = vpop.f32.mrb[0].mxu0
        %v732 = vadd.f32 %v638, %v731
        %v733 = vpop.f32.mrb[0].mxu0
        %v734 = vadd.f32 %v638, %v733
        %v735 = vpop.f32.mrb[0].mxu0
        %v736 = vadd.f32 %v643, %v735
        %v737 = vpop.f32.mrb[0].mxu0
        %v738 = vadd.f32 %v643, %v737
        %739 = vdwg.mxu0
        %740 = vmatprep.subr.bf16.mxu0 %v622
        %741 = vmatpush1.bf16.msra.mxu0 %v621
        %742 = vmatprep.subr.bf16.mxu0 %v630
        %743 = vmatpush1.bf16.msra.mxu0 %v629
        %744 = vmatprep.subr.bf16.mxu0 0
        %745 = vmatpush1.bf16.msra.mxu0 0
        %746 = vmatprep.subr.bf16.mxu0 0
        %747 = vmatpush1.bf16.msra.mxu0 0
        %748 = vmatprep.subr.bf16.mxu0 0
        %749 = vmatpush1.bf16.msra.mxu0 0
        %750 = vmatprep.subr.bf16.mxu0 0
        %751 = vmatpush1.bf16.msra.mxu0 0
        %752 = vmatprep.subr.bf16.mxu0 0
        %753 = vmatpush1.bf16.msra.mxu0 0
        %754 = vmatprep.subr.bf16.mxu0 0
        %755 = vmatpush1.bf16.msra.mxu0 0
        %756 = vmatprep.subr.bf16.mxu0 0
        %757 = vmatpush1.bf16.msra.mxu0 0
        %758 = vmatprep.subr.bf16.mxu0 0
        %759 = vmatpush1.bf16.msra.mxu0 0
        %760 = vmatprep.subr.bf16.mxu0 0
        %761 = vmatpush1.bf16.msra.mxu0 0
        %762 = vmatprep.subr.bf16.mxu0 0
        %763 = vmatpush1.bf16.msra.mxu0 0
        %764 = vmatprep.subr.bf16.mxu0 0
        %765 = vmatpush1.bf16.msra.mxu0 0
        %766 = vmatprep.subr.bf16.mxu0 0
        %767 = vmatpush1.bf16.msra.mxu0 0
        %768 = vmatprep.subr.bf16.mxu0 0
        %769 = vmatpush1.bf16.msra.mxu0 0
        %770 = vmatprep.subr.bf16.mxu0 0
        %771 = vmatpush1.bf16.msra.mxu0 0
        %772 = vmatprep.mubr.bf16.mxu0 0
        %773 = vmatmul.mubr.bf16.gmra.mrb[0].mxu0 %v652
        %v774 = vpop.f32.mrb[0].mxu0
        %v775 = vadd.f32 %v638, %v774
        %v776 = vpop.f32.mrb[0].mxu0
        %v777 = vadd.f32 %v638, %v776
        %v778 = vpop.f32.mrb[0].mxu0
        %v779 = vadd.f32 %v643, %v778
        %v780 = vpop.f32.mrb[0].mxu0
        %v781 = vadd.f32 %v643, %v780
        %782 = vdwg.mxu0
        %783 = vmatprep.subr.bf16.mxu0 %v624
        %784 = vmatpush1.bf16.msra.mxu0 %v623
        %785 = vmatprep.subr.bf16.mxu0 %v632
        %786 = vmatpush1.bf16.msra.mxu0 %v631
        %787 = vmatprep.subr.bf16.mxu0 0
        %788 = vmatpush1.bf16.msra.mxu0 0
        %789 = vmatprep.subr.bf16.mxu0 0
        %790 = vmatpush1.bf16.msra.mxu0 0
        %791 = vmatprep.subr.bf16.mxu0 0
        %792 = vmatpush1.bf16.msra.mxu0 0
        %793 = vmatprep.subr.bf16.mxu0 0
        %794 = vmatpush1.bf16.msra.mxu0 0
        %795 = vmatprep.subr.bf16.mxu0 0
        %796 = vmatpush1.bf16.msra.mxu0 0
        %797 = vmatprep.subr.bf16.mxu0 0
        %798 = vmatpush1.bf16.msra.mxu0 0
        %799 = vmatprep.subr.bf16.mxu0 0
        %800 = vmatpush1.bf16.msra.mxu0 0
        %801 = vmatprep.subr.bf16.mxu0 0
        %802 = vmatpush1.bf16.msra.mxu0 0
        %803 = vmatprep.subr.bf16.mxu0 0
        %804 = vmatpush1.bf16.msra.mxu0 0
        %805 = vmatprep.subr.bf16.mxu0 0
        %806 = vmatpush1.bf16.msra.mxu0 0
        %807 = vmatprep.subr.bf16.mxu0 0
        %808 = vmatpush1.bf16.msra.mxu0 0
        %809 = vmatprep.subr.bf16.mxu0 0
        %810 = vmatpush1.bf16.msra.mxu0 0
        %811 = vmatprep.subr.bf16.mxu0 0
        %812 = vmatpush1.bf16.msra.mxu0 0
        %813 = vmatprep.subr.bf16.mxu0 0
        %814 = vmatpush1.bf16.msra.mxu0 0
        %815 = vmatprep.mubr.bf16.mxu0 0
        %816 = vmatmul.mubr.bf16.gmra.mrb[0].mxu0 %v652
        %v817 = vpop.f32.mrb[0].mxu0
        %v818 = vadd.f32 %v638, %v817
        %v819 = vpop.f32.mrb[0].mxu0
        %v820 = vadd.f32 %v638, %v819
        %v821 = vpop.f32.mrb[0].mxu0
        %v822 = vadd.f32 %v643, %v821
        %v823 = vpop.f32.mrb[0].mxu0
        %v824 = vadd.f32 %v643, %v823
        %825 = vdwg.mxu0
        %v826 = vmax.f32 %v689, 0.0
        %v827 = vmax.f32 %v691, 0.0
        %v828 = vmax.f32 %v732, 0.0
        %v829 = vmax.f32 %v734, 0.0
        %v830 = vmax.f32 %v775, 0.0
        %v831 = vmax.f32 %v777, 0.0
        %v832 = vmax.f32 %v818, 0.0
        %v833 = vmax.f32 %v820, 0.0
        %v834 = vmax.f32 %v693, 0.0
        %v835 = vmax.f32 %v695, 0.0
        %v836 = vmax.f32 %v736, 0.0
        %v837 = vmax.f32 %v738, 0.0
        %v838 = vmax.f32 %v779, 0.0
        %v839 = vmax.f32 %v781, 0.0
        %v840 = vmax.f32 %v822, 0.0
        %v841 = vmax.f32 %v824, 0.0
        %v842 = vld [vmem:[%s5] sm:$0xff]
        %v843 = vld [vmem:[%s5 + $0x8] sm:$0xff]
        %845 = vset.pattern.permute.xlu0 0
        %846 = vperm.xlu0 %845, %v842
        %v847 = vpop.permute.xlu0 %846
        %850 = vset.pattern.permute.xlu0 0
        %851 = vperm.xlu0 %850, %v843
        %v852 = vpop.permute.xlu0 %851
        %v854 = vmul.f32 %v847, %v826
        %v855 = vmul.f32 %v847, %v827
        %v856 = vmul.f32 %v847, %v828
        %v857 = vmul.f32 %v847, %v829
        %v858 = vmul.f32 %v847, %v830
        %v859 = vmul.f32 %v847, %v831
        %v860 = vmul.f32 %v847, %v832
        %v861 = vmul.f32 %v847, %v833
        %v862 = vmul.f32 %v852, %v834
        %v863 = vmul.f32 %v852, %v835
        %v864 = vmul.f32 %v852, %v836
        %v865 = vmul.f32 %v852, %v837
        %v866 = vmul.f32 %v852, %v838
        %v867 = vmul.f32 %v852, %v839
        %v868 = vmul.f32 %v852, %v840
        %v869 = vmul.f32 %v852, %v841
        %v870 = vadd.f32 %v854, %v862
        %v871 = vrot.slane %v870, 4
        %v872 = vadd.f32 %v870, %v871
        %v873 = vrot.slane %v872, 2
        %v874 = vadd.f32 %v872, %v873
        %v875 = vrot.slane %v874, 1
        %v876 = vadd.f32 %v874, %v875
        %v877 = vadd.f32 %v855, %v863
        %v878 = vrot.slane %v877, 4
        %v879 = vadd.f32 %v877, %v878
        %v880 = vrot.slane %v879, 2
        %v881 = vadd.f32 %v879, %v880
        %v882 = vrot.slane %v881, 1
        %v883 = vadd.f32 %v881, %v882
        %v884 = vadd.f32 %v856, %v864
        %v885 = vrot.slane %v884, 4
        %v886 = vadd.f32 %v884, %v885
        %v887 = vrot.slane %v886, 2
        %v888 = vadd.f32 %v886, %v887
        %v889 = vrot.slane %v888, 1
        %v890 = vadd.f32 %v888, %v889
        %v891 = vadd.f32 %v857, %v865
        %v892 = vrot.slane %v891, 4
        %v893 = vadd.f32 %v891, %v892
        %v894 = vrot.slane %v893, 2
        %v895 = vadd.f32 %v893, %v894
        %v896 = vrot.slane %v895, 1
        %v897 = vadd.f32 %v895, %v896
        %v898 = vadd.f32 %v858, %v866
        %v899 = vrot.slane %v898, 4
        %v900 = vadd.f32 %v898, %v899
        %v901 = vrot.slane %v900, 2
        %v902 = vadd.f32 %v900, %v901
        %v903 = vrot.slane %v902, 1
        %v904 = vadd.f32 %v902, %v903
        %v905 = vadd.f32 %v859, %v867
        %v906 = vrot.slane %v905, 4
        %v907 = vadd.f32 %v905, %v906
        %v908 = vrot.slane %v907, 2
        %v909 = vadd.f32 %v907, %v908
        %v910 = vrot.slane %v909, 1
        %v911 = vadd.f32 %v909, %v910
        %v912 = vadd.f32 %v860, %v868
        %v913 = vrot.slane %v912, 4
        %v914 = vadd.f32 %v912, %v913
        %v915 = vrot.slane %v914, 2
        %v916 = vadd.f32 %v914, %v915
        %v917 = vrot.slane %v916, 1
        %v918 = vadd.f32 %v916, %v917
        %v919 = vadd.f32 %v861, %v869
        %v920 = vrot.slane %v919, 4
        %v921 = vadd.f32 %v919, %v920
        %v922 = vrot.slane %v921, 2
        %v923 = vadd.f32 %v921, %v922
        %v924 = vrot.slane %v923, 1
        %v925 = vadd.f32 %v923, %v924
        %v926 = vld [vmem:[#allocation2] sm:$0x1]
        %928 = vset.pattern.permute.xlu0 0
        %929 = vperm.xlu0 %928, %v926
        %v930 = vpop.permute.xlu0 %929
        %v932 = vlaneseq
        %v933 = vshrl.u32 %v932, 7
        %v934 = vsub.s32 0, %v933
        %v935 = vrot.slane %v930, %v934
        %v936 = vadd.f32 %v876, %v935
        %v937 = vadd.f32 %v883, %v935
        %v938 = vadd.f32 %v890, %v935
        %v939 = vadd.f32 %v897, %v935
        %v940 = vadd.f32 %v904, %v935
        %v941 = vadd.f32 %v911, %v935
        %v942 = vadd.f32 %v918, %v935
        %v943 = vadd.f32 %v925, %v935
        %v944 = vxor.u32 %v936, 2147483648
        %v945 = vxor.u32 %v937, 2147483648
        %v946 = vxor.u32 %v938, 2147483648
        %v947 = vxor.u32 %v939, 2147483648
        %v948 = vxor.u32 %v940, 2147483648
        %v949 = vxor.u32 %v941, 2147483648
        %v950 = vxor.u32 %v942, 2147483648
        %v951 = vxor.u32 %v943, 2147483648
        %v952 = vmul.f32 %v944, 1.442695
        %v953 = vpow.pop %v952
        %v954 = vmul.f32 %v945, 1.442695
        %v955 = vpow.pop %v954
        %v956 = vmul.f32 %v946, 1.442695
        %v957 = vpow.pop %v956
        %v958 = vmul.f32 %v947, 1.442695
        %v959 = vpow.pop %v958
        %v960 = vmul.f32 %v948, 1.442695
        %v961 = vpow.pop %v960
        %v962 = vmul.f32 %v949, 1.442695
        %v963 = vpow.pop %v962
        %v964 = vmul.f32 %v950, 1.442695
        %v965 = vpow.pop %v964
        %v966 = vmul.f32 %v951, 1.442695
        %v967 = vpow.pop %v966
        %v968 = vadd.f32 %v953, 1.0
        %v969 = vadd.f32 %v955, 1.0
        %v970 = vadd.f32 %v957, 1.0
        %v971 = vadd.f32 %v959, 1.0
        %v972 = vadd.f32 %v961, 1.0
        %v973 = vadd.f32 %v963, 1.0
        %v974 = vadd.f32 %v965, 1.0
        %v975 = vadd.f32 %v967, 1.0
        %v976 = vrcp.pop %v968
        %v977 = vmul.f32 1.0, %v976
        %v978 = vrcp.pop %v969
        %v979 = vmul.f32 1.0, %v978
        %v980 = vrcp.pop %v970
        %v981 = vmul.f32 1.0, %v980
        %v982 = vrcp.pop %v971
        %v983 = vmul.f32 1.0, %v982
        %v984 = vrcp.pop %v972
        %v985 = vmul.f32 1.0, %v984
        %v986 = vrcp.pop %v973
        %v987 = vmul.f32 1.0, %v986
        %v988 = vrcp.pop %v974
        %v989 = vmul.f32 1.0, %v988
        %v990 = vrcp.pop %v975
        %v991 = vmul.f32 1.0, %v990
        %v1000 = vcombine.low %v977, %v979
        %v1001 = vcombine.low %v981, %v983
        %v1002 = vcombine.low %v985, %v987
        %v1003 = vcombine.low %v989, %v991
        %v1005 = vunpack.c.l.s4 1966171168
        %v1006 = vunpack.c.0.s8 %v1005
        %v1007 = vlaneseq
        %v1008 = vshrl.u32 %v1007, 7
        %v1009 = vsub.s32 %v1006, %v1008
        %v1010 = vrot.slane %v1000, %v1009
        %v1012 = vunpack.c.l.s4 1966171168
        %v1013 = vunpack.c.0.s8 %v1012
        %v1014 = vlaneseq
        %v1015 = vshrl.u32 %v1014, 7
        %v1016 = vsub.s32 %v1013, %v1015
        %v1017 = vrot.slane %v1001, %v1016
        %v1019 = vunpack.c.l.s4 1966171168
        %v1020 = vunpack.c.0.s8 %v1019
        %v1021 = vlaneseq
        %v1022 = vshrl.u32 %v1021, 7
        %v1023 = vsub.s32 %v1020, %v1022
        %v1024 = vrot.slane %v1002, %v1023
        %v1026 = vunpack.c.l.s4 1966171168
        %v1027 = vunpack.c.0.s8 %v1026
        %v1028 = vlaneseq
        %v1029 = vshrl.u32 %v1028, 7
        %v1030 = vsub.s32 %v1027, %v1029
        %v1031 = vrot.slane %v1003, %v1030
        %v1032 = vcombine.low %v1010, %v1017
        %v1033 = vcombine.low %v1024, %v1031
        %v1035 = vunpack.c.l.s4 1966171168
        %v1036 = vunpack.c.0.s8 %v1035
        %v1037 = vlaneseq
        %v1038 = vshrl.u32 %v1037, 7
        %v1039 = vsub.s32 %v1036, %v1038
        %v1040 = vrot.slane %v1032, %v1039
        %v1042 = vunpack.c.l.s4 1966171168
        %v1043 = vunpack.c.0.s8 %v1042
        %v1044 = vlaneseq
        %v1045 = vshrl.u32 %v1044, 7
        %v1046 = vsub.s32 %v1043, %v1045
        %v1047 = vrot.slane %v1033, %v1046
        %v1048 = vcombine.low %v1040, %v1047
        %1050 = vst [vmem:[%s298] sm:$0xff] %v1048
        %s1051 = sand.u32 %s186, 1
        %s1052 = scalar_lea.sflag [#allocation5], %s1051
        %s1053 = sand.u32 %s186, 1
        %s1054 = smul.addr %s1053, 8
        %s1055 = scalar_lea.vmem [#allocation6], %s1054
        // Predicated region
        $region53: #{tpu_custom_call.1} parent=47 // pred_check
          %p1056 = pneg %p196
        $region54: #{tpu_custom_call.1} parent=47 // pred_check_branch
          %1058 = sbr.rel (%p1056) target = $region56
        $region55: #{tpu_custom_call.1} parent=47 // pred_region
          %s1059 = smul.u32 8, %s26
          %s1061 = ssub.s32 128, 128
          %1062 = vsyncadd %s1052, %s1061
          %s1063 = smul.addr %s1059, 16
          %s1064 = scalar_lea.hbm %s7, %s1063
          %s1066 = sshll.u32 %s1055, 4
          %s1067 = int_to_ptr.vmem [resolvable:$true] %s1066
          %1069 = dma.vmem_to_hbm [thread:$0]  %s1067, 128, %s1064, %s1052
        $region56: #{tpu_custom_call.1} parent=47 // pred_fallthru
          _
      $region48: #{tpu_custom_call.1} parent=5 // pred_fallthru
        _
      %p1070 = scmp.le.s32.totalorder 2, %s21
      // Predicated region
      $region57: #{tpu_custom_call.1} parent=5 // pred_check
        %p1071 = pneg %p1070
      $region58: #{tpu_custom_call.1} parent=5 // pred_check_branch
        %1073 = sbr.rel (%p1071) target = $region60
      $region59: #{tpu_custom_call.1} parent=5 // pred_region
        %s1074 = ssub.s32 %s21, 2
        // Predicated region
        $region61: #{tpu_custom_call.1} parent=59 // pred_check
          %p1075 = pneg %p202
        $region62: #{tpu_custom_call.1} parent=59 // pred_check_branch
          %1077 = sbr.rel (%p1075) target = $region64
        $region63: #{tpu_custom_call.1} parent=59 // pred_region
          %s1078 = sand.u32 %s187, 1
          %s1079 = scalar_lea.sflag [#allocation5], %s1078
          %s1080 = sand.u32 %s187, 1
          %s1081 = smul.addr %s1080, 8
          %s1082 = scalar_lea.vmem [#allocation6], %s1081
          %1083 = dma.done %s1079, 128
        $region64: #{tpu_custom_call.1} parent=59 // pred_fallthru
          _
      $region60: #{tpu_custom_call.1} parent=5 // pred_fallthru
        _
    $region6: #{tpu_custom_call.1} parent=1 // loop_footer
      %s25 = sadd.s32 1, %s21
    $region7: #{tpu_custom_call.1} parent=1 // loop_footer_branch
      %20 = sbr.rel target = $region3
    $region8: #{tpu_custom_call.1} parent=1 // loop_exit
      _
    %1084 = vsyncpa [#allocation4], 1
    %s1085 = scalar_lea.sflag [#allocation4], 1
    %1086 = vsyncpa %s1085, 1
    %1087 = vsyncpa [#allocation5], 1
    %s1088 = scalar_lea.sflag [#allocation5], 1
    %1089 = vsyncpa %s1088, 1

// kernel: tpu_custom_call.1
$region0: #{tpu_custom_call.1}
  #allocation0 [shape = 'u32[]', space=smem, size = 0x4, offset = 0x4, fixed_abs, tag = 'smem constant byte address 0x4 - core index']
  #allocation1 [shape = 'u32[144,128]{1,0:T(1,128)}', space=vmem, size = 0x12000, scoped, tag = 'internal scratch']
  #allocation2 [shape = 'f32[1,1]{1,0:T(1,128)S(1)}', space=vmem, size = 0x200, scoped, tag = 'scoped memory for tpu_custom_call.1']
  %s0 = inlined_call_operand.hbm [shape: f32[16,2048], index: 0, kind: input, shape index: {}]
  %s1 = inlined_call_operand.vmem [shape: bf16[32,16], index: 1, kind: input, shape index: {}]
  %s2 = inlined_call_operand.vmem [shape: f32[32,1], index: 2, kind: input, shape index: {}]
  %s3 = inlined_call_operand.vmem [shape: bf16[16,32], index: 3, kind: input, shape index: {}]
  %s4 = inlined_call_operand.vmem [shape: f32[16,1], index: 4, kind: input, shape index: {}]
  %s5 = inlined_call_operand.vmem [shape: f32[16,1], index: 5, kind: input, shape index: {}]
  %s6 = inlined_call_operand.<no memory space> [shape: f32[1,1], index: 6, kind: input, shape index: {}]
  %s7 = inlined_call_operand.hbm [shape: f32[1,2048], index: 7, kind: output, shape index: {}]
  %s8 = sld [smem:[#allocation0]]
  $region65: #{tpu_custom_call.1} parent=0
    _
  %s10 = ssub.s32 1, %s8
  %s11 = scalar_select 0, %s10, %s8
  %v12 = vstv %s6
  %13 = vst [vmem:[#allocation2] sm:$0x1] %v12
  $region1: #{tpu_custom_call.1} parent=0
    #allocation3 [shape = 'u8[131072]{0}', space=vmem, size = 0x20000, scoped, tag = 'input window, operand 0']
    #allocation4 [shape = 's32[2]{0}', space=sflag, size = 0x8, scoped, tag = 'scoped memory for tpu_custom_call.1']
    #allocation5 [shape = 's32[2]{0}', space=sflag, size = 0x8, scoped, tag = 'scoped memory for tpu_custom_call.1']
    #allocation6 [shape = 'u8[8192]{0}', space=vmem, size = 0x2000, scoped, tag = 'output window, operand 0']
    %14 = vsyncpa [#allocation4], 0
    %s15 = scalar_lea.sflag [#allocation4], 1
    %16 = vsyncpa %s15, 0
    %17 = vsyncpa [#allocation5], 0
    %s18 = scalar_lea.sflag [#allocation5], 1
    %19 = vsyncpa %s18, 0
    loop: start=0, step=1, limit=4
    $region2: #{tpu_custom_call.1} parent=1 // loop_pre_header
      _
    $region3: #{tpu_custom_call.1} parent=1 // loop_header
      %s21 = sphi 0, %s25
      %p22 = scmp.ge.s32.totalorder %s21, 4
      %s31 = sphi 0, %s33
      %s34 = sphi 0, %s31
      %s35 = sphi 0, %s34
      %s51 = sphi 0, %s35
      %s55 = sphi 0, %s55
      %s57 = sphi 0, %s55
      %s58 = sphi 0, %s57
      %s72 = sphi 0, %s58
      %s76 = sphi 0, %s76
      %s78 = sphi 0, %s76
      %s79 = sphi 0, %s78
      %s93 = sphi 0, %s79
      %s97 = sphi 0, %s97
      %s99 = sphi 0, %s97
      %s100 = sphi 0, %s99
      %s114 = sphi 0, %s100
      %s118 = sphi 0, %s118
      %s120 = sphi 0, %s118
      %s121 = sphi 0, %s120
      %s135 = sphi 0, %s121
      %s139 = sphi 0, %s139
      %s141 = sphi 0, %s139
      %s142 = sphi 0, %s141
      %s156 = sphi 0, %s142
      %s160 = sphi 0, %s160
      %s162 = sphi 0, %s160
      %s163 = sphi 0, %s162
      %s177 = sphi 0, %s163
      %s183 = sphi 0, %s185
      %s186 = sphi 0, %s183
      %s187 = sphi 0, %s186
      %s203 = sphi 0, %s187
    $region4: #{tpu_custom_call.1} parent=1 // loop_header_branch
      %24 = sbr.rel (%p22) target = $region8
    $region5: #{tpu_custom_call.1} parent=1 // loop_body
      %s26 = ssub.s32 %s21, 1
      %s27 = ssub.s32 %s21, 2
      %s28 = sadd.s32 %s21, 1
      %s29 = ssub.s32 %s21, %s28
      %p30 = scmp.eq.s32.totalorder %s29, 0
      %s32 = sadd.s32 %s31, 1
      %s33 = scalar_select %p30, %s31, %s32
      %p36 = pneg %p30
      %p37 = scmp.eq.s32.totalorder %s21, 1
      %p38 = por %p36, %p37
      %p39 = scmp.ne.s32.totalorder %s31, %s34
      %p40 = scmp.eq.s32.totalorder %s21, 0
      %p41 = por %p39, %p40
      %p42 = scmp.ne.s32.totalorder %s31, %s34
      %p43 = scmp.eq.s32.totalorder %s26, 1
      %p44 = por %p42, %p43
      %p45 = scmp.ne.s32.totalorder %s34, %s35
      %p46 = scmp.eq.s32.totalorder %s26, 0
      %p47 = por %p45, %p46
      %p48 = scmp.ne.s32.totalorder %s34, %s35
      %p49 = scmp.eq.s32.totalorder %s27, 1
      %p50 = por %p48, %p49
      %p52 = scmp.ne.s32.totalorder %s35, %s51
      %p53 = scmp.eq.s32.totalorder %s27, 0
      %p54 = por %p52, %p53
      %s56 = sadd.s32 %s55, 1
      %p59 = scmp.eq.s32.totalorder %s21, 1
      %p60 = scmp.ne.s32.totalorder %s55, %s57
      %p61 = scmp.eq.s32.totalorder %s21, 0
      %p62 = por %p60, %p61
      %p63 = scmp.ne.s32.totalorder %s55, %s57
      %p64 = scmp.eq.s32.totalorder %s26, 1
      %p65 = por %p63, %p64
      %p66 = scmp.ne.s32.totalorder %s57, %s58
      %p67 = scmp.eq.s32.totalorder %s26, 0
      %p68 = por %p66, %p67
      %p69 = scmp.ne.s32.totalorder %s57, %s58
      %p70 = scmp.eq.s32.totalorder %s27, 1
      %p71 = por %p69, %p70
      %p73 = scmp.ne.s32.totalorder %s58, %s72
      %p74 = scmp.eq.s32.totalorder %s27, 0
      %p75 = por %p73, %p74
      %s77 = sadd.s32 %s76, 1
      %p80 = scmp.eq.s32.totalorder %s21, 1
      %p81 = scmp.ne.s32.totalorder %s76, %s78
      %p82 = scmp.eq.s32.totalorder %s21, 0
      %p83 = por %p81, %p82
      %p84 = scmp.ne.s32.totalorder %s76, %s78
      %p85 = scmp.eq.s32.totalorder %s26, 1
      %p86 = por %p84, %p85
      %p87 = scmp.ne.s32.totalorder %s78, %s79
      %p88 = scmp.eq.s32.totalorder %s26, 0
      %p89 = por %p87, %p88
      %p90 = scmp.ne.s32.totalorder %s78, %s79
      %p91 = scmp.eq.s32.totalorder %s27, 1
      %p92 = por %p90, %p91
      %p94 = scmp.ne.s32.totalorder %s79, %s93
      %p95 = scmp.eq.s32.totalorder %s27, 0
      %p96 = por %p94, %p95
      %s98 = sadd.s32 %s97, 1
      %p101 = scmp.eq.s32.totalorder %s21, 1
      %p102 = scmp.ne.s32.totalorder %s97, %s99
      %p103 = scmp.eq.s32.totalorder %s21, 0
      %p104 = por %p102, %p103
      %p105 = scmp.ne.s32.totalorder %s97, %s99
      %p106 = scmp.eq.s32.totalorder %s26, 1
      %p107 = por %p105, %p106
      %p108 = scmp.ne.s32.totalorder %s99, %s100
      %p109 = scmp.eq.s32.totalorder %s26, 0
      %p110 = por %p108, %p109
      %p111 = scmp.ne.s32.totalorder %s99, %s100
      %p112 = scmp.eq.s32.totalorder %s27, 1
      %p113 = por %p111, %p112
      %p115 = scmp.ne.s32.totalorder %s100, %s114
      %p116 = scmp.eq.s32.totalorder %s27, 0
      %p117 = por %p115, %p116
      %s119 = sadd.s32 %s118, 1
      %p122 = scmp.eq.s32.totalorder %s21, 1
      %p123 = scmp.ne.s32.totalorder %s118, %s120
      %p124 = scmp.eq.s32.totalorder %s21, 0
      %p125 = por %p123, %p124
      %p126 = scmp.ne.s32.totalorder %s118, %s120
      %p127 = scmp.eq.s32.totalorder %s26, 1
      %p128 = por %p126, %p127
      %p129 = scmp.ne.s32.totalorder %s120, %s121
      %p130 = scmp.eq.s32.totalorder %s26, 0
      %p131 = por %p129, %p130
      %p132 = scmp.ne.s32.totalorder %s120, %s121
      %p133 = scmp.eq.s32.totalorder %s27, 1
      %p134 = por %p132, %p133
      %p136 = scmp.ne.s32.totalorder %s121, %s135
      %p137 = scmp.eq.s32.totalorder %s27, 0
      %p138 = por %p136, %p137
      %s140 = sadd.s32 %s139, 1
      %p143 = scmp.eq.s32.totalorder %s21, 1
      %p144 = scmp.ne.s32.totalorder %s139, %s141
      %p145 = scmp.eq.s32.totalorder %s21, 0
      %p146 = por %p144, %p145
      %p147 = scmp.ne.s32.totalorder %s139, %s141
      %p148 = scmp.eq.s32.totalorder %s26, 1
      %p149 = por %p147, %p148
      %p150 = scmp.ne.s32.totalorder %s141, %s142
      %p151 = scmp.eq.s32.totalorder %s26, 0
      %p152 = por %p150, %p151
      %p153 = scmp.ne.s32.totalorder %s141, %s142
      %p154 = scmp.eq.s32.totalorder %s27, 1
      %p155 = por %p153, %p154
      %p157 = scmp.ne.s32.totalorder %s142, %s156
      %p158 = scmp.eq.s32.totalorder %s27, 0
      %p159 = por %p157, %p158
      %s161 = sadd.s32 %s160, 1
      %p164 = scmp.eq.s32.totalorder %s21, 1
      %p165 = scmp.ne.s32.totalorder %s160, %s162
      %p166 = scmp.eq.s32.totalorder %s21, 0
      %p167 = por %p165, %p166
      %p168 = scmp.ne.s32.totalorder %s160, %s162
      %p169 = scmp.eq.s32.totalorder %s26, 1
      %p170 = por %p168, %p169
      %p171 = scmp.ne.s32.totalorder %s162, %s163
      %p172 = scmp.eq.s32.totalorder %s26, 0
      %p173 = por %p171, %p172
      %p174 = scmp.ne.s32.totalorder %s162, %s163
      %p175 = scmp.eq.s32.totalorder %s27, 1
      %p176 = por %p174, %p175
      %p178 = scmp.ne.s32.totalorder %s163, %s177
      %p179 = scmp.eq.s32.totalorder %s27, 0
      %p180 = por %p178, %p179
      %s181 = ssub.s32 %s21, %s28
      %p182 = scmp.eq.s32.totalorder %s181, 0
      %s184 = sadd.s32 %s183, 1
      %s185 = scalar_select %p182, %s183, %s184
      %p188 = pneg %p182
      %p189 = scmp.eq.s32.totalorder %s21, 1
      %p190 = por %p188, %p189
      %p191 = scmp.ne.s32.totalorder %s183, %s186
      %p192 = scmp.eq.s32.totalorder %s21, 0
      %p193 = por %p191, %p192
      %p194 = scmp.ne.s32.totalorder %s183, %s186
      %p195 = scmp.eq.s32.totalorder %s26, 1
      %p196 = por %p194, %p195
      %p197 = scmp.ne.s32.totalorder %s186, %s187
      %p198 = scmp.eq.s32.totalorder %s26, 0
      %p199 = por %p197, %p198
      %p200 = scmp.ne.s32.totalorder %s186, %s187
      %p201 = scmp.eq.s32.totalorder %s27, 1
      %p202 = por %p200, %p201
      %p204 = scmp.ne.s32.totalorder %s187, %s203
      %p205 = scmp.eq.s32.totalorder %s27, 0
      %p206 = por %p204, %p205
      %p207 = scmp.le.s32.totalorder 1, %s21
      %p208 = scmp.lt.s32.totalorder %s21, 3
      %p209 = pnand %p207, %p208
      %p210 = pneg %p209
      // Predicated region
      $region9: #{tpu_custom_call.1} parent=5 // pred_check
        _
      $region10: #{tpu_custom_call.1} parent=5 // pred_check_branch
        %212 = sbr.rel (%p209) target = $region12
      $region11: #{tpu_custom_call.1} parent=5 // pred_region
        %s213 = ssub.s32 %s21, 1
        // Predicated region
        $region13: #{tpu_custom_call.1} parent=11 // pred_check
          %p214 = pneg %p68
        $region14: #{tpu_custom_call.1} parent=11 // pred_check_branch
          %216 = sbr.rel (%p214) target = $region16
        $region15: #{tpu_custom_call.1} parent=11 // pred_region
          _
        $region16: #{tpu_custom_call.1} parent=11 // pred_fallthru
          _
        // Predicated region
        $region17: #{tpu_custom_call.1} parent=11 // pred_check
          %p217 = pneg %p89
        $region18: #{tpu_custom_call.1} parent=11 // pred_check_branch
          %219 = sbr.rel (%p217) target = $region20
        $region19: #{tpu_custom_call.1} parent=11 // pred_region
          _
        $region20: #{tpu_custom_call.1} parent=11 // pred_fallthru
          _
        // Predicated region
        $region21: #{tpu_custom_call.1} parent=11 // pred_check
          %p220 = pneg %p110
        $region22: #{tpu_custom_call.1} parent=11 // pred_check_branch
          %222 = sbr.rel (%p220) target = $region24
        $region23: #{tpu_custom_call.1} parent=11 // pred_region
          _
        $region24: #{tpu_custom_call.1} parent=11 // pred_fallthru
          _
        // Predicated region
        $region25: #{tpu_custom_call.1} parent=11 // pred_check
          %p223 = pneg %p131
        $region26: #{tpu_custom_call.1} parent=11 // pred_check_branch
          %225 = sbr.rel (%p223) target = $region28
        $region27: #{tpu_custom_call.1} parent=11 // pred_region
          _
        $region28: #{tpu_custom_call.1} parent=11 // pred_fallthru
          _
        // Predicated region
        $region29: #{tpu_custom_call.1} parent=11 // pred_check
          %p226 = pneg %p152
        $region30: #{tpu_custom_call.1} parent=11 // pred_check_branch
          %228 = sbr.rel (%p226) target = $region32
        $region31: #{tpu_custom_call.1} parent=11 // pred_region
          _
        $region32: #{tpu_custom_call.1} parent=11 // pred_fallthru
          _
        // Predicated region
        $region33: #{tpu_custom_call.1} parent=11 // pred_check
          %p229 = pneg %p173
        $region34: #{tpu_custom_call.1} parent=11 // pred_check_branch
          %231 = sbr.rel (%p229) target = $region36
        $region35: #{tpu_custom_call.1} parent=11 // pred_region
          _
        $region36: #{tpu_custom_call.1} parent=11 // pred_fallthru
          _
      $region12: #{tpu_custom_call.1} parent=5 // pred_fallthru
        _
      %p232 = scmp.lt.s32.totalorder %s21, 2
      // Predicated region
      $region37: #{tpu_custom_call.1} parent=5 // pred_check
        %p233 = pneg %p232
      $region38: #{tpu_custom_call.1} parent=5 // pred_check_branch
        %235 = sbr.rel (%p233) target = $region40
      $region39: #{tpu_custom_call.1} parent=5 // pred_region
        // Predicated region
        $region41: #{tpu_custom_call.1} parent=39 // pred_check
          %p236 = pneg %p41
        $region42: #{tpu_custom_call.1} parent=39 // pred_check_branch
          %238 = sbr.rel (%p236) target = $region44
        $region43: #{tpu_custom_call.1} parent=39 // pred_region
          %s239 = sand.u32 %s31, 1
          %s240 = scalar_lea.sflag [#allocation4], %s239
          %s241 = sand.u32 %s31, 1
          %s242 = smul.addr %s241, 128
          %s243 = scalar_lea.vmem [#allocation3], %s242
          %s244 = smul.u32 8, %s21
          %s246 = ssub.s32 2048, 2048
          %247 = vsyncadd %s240, %s246
          %s248 = smul.addr %s244, 128
          %s249 = scalar_lea.hbm %s0, %s248
          %s250 = sshll.u32 %s243, 4
          %s251 = int_to_ptr.vmem [resolvable:$true] %s250
          %256 = dma.hbm_to_vmem [thread:$0]  %s249, 2048, %s251, %s240, 2048, 1024, 64
        $region44: #{tpu_custom_call.1} parent=39 // pred_fallthru
          _
      $region40: #{tpu_custom_call.1} parent=5 // pred_fallthru
        _
      %p257 = scmp.le.s32.totalorder 1, %s21
      %p258 = scmp.lt.s32.totalorder %s21, 3
      %p259 = pnand %p257, %p258
      %p260 = pneg %p259
      // Predicated region
      $region45: #{tpu_custom_call.1} parent=5 // pred_check
        _
      $region46: #{tpu_custom_call.1} parent=5 // pred_check_branch
        %262 = sbr.rel (%p259) target = $region48
      $region47: #{tpu_custom_call.1} parent=5 // pred_region
        %s263 = ssub.s32 %s21, 1
        %s264 = sand.u32 %s34, 1
        %s265 = scalar_lea.sflag [#allocation4], %s264
        %s266 = sand.u32 %s34, 1
        %s267 = smul.addr %s266, 128
        %s268 = scalar_lea.vmem [#allocation3], %s267
        // Predicated region
        $region49: #{tpu_custom_call.1} parent=47 // pred_check
          %p269 = pneg %p47
        $region50: #{tpu_custom_call.1} parent=47 // pred_check_branch
          %271 = sbr.rel (%p269) target = $region52
        $region51: #{tpu_custom_call.1} parent=47 // pred_region
          %272 = dma.done %s265, 2048
        $region52: #{tpu_custom_call.1} parent=47 // pred_fallthru
          _
        %s273 = sand.u32 %s34, 1
        %s274 = scalar_lea.sflag [#allocation4], %s273
        %s275 = sand.u32 %s34, 1
        %s276 = smul.addr %s275, 128
        %s277 = scalar_lea.vmem [#allocation3], %s276
        %p278 = pneg %p47
        %p279 = pneg %p44
        %p280 = pneg %p68
        %p281 = pneg %p65
        %p282 = pneg %p89
        %p283 = pneg %p86
        %p284 = pneg %p110
        %p285 = pneg %p107
        %p286 = pneg %p131
        %p287 = pneg %p128
        %p288 = pneg %p152
        %p289 = pneg %p149
        %p290 = pneg %p173
        %p291 = pneg %p170
        %p292 = pneg %p199
        %p293 = pneg %p196
        %s294 = sand.u32 %s186, 1
        %s295 = scalar_lea.sflag [#allocation5], %s294
        %s296 = sand.u32 %s186, 1
        %s297 = smul.addr %s296, 8
        %s298 = scalar_lea.vmem [#allocation6], %s297
        %s299 = smul.u32 8, %s26
        %s300 = smul.u32 8, %s26
        %v302 = vld [vmem:[%s268] sm:$0xff]
        %v303 = vld [vmem:[%s268 + $0x8] sm:$0xff]
        %v304 = vld [vmem:[%s268 + $0x10] sm:$0xff]
        %v305 = vld [vmem:[%s268 + $0x18] sm:$0xff]
        %v306 = vld [vmem:[%s268 + $0x20] sm:$0xff]
        %v307 = vld [vmem:[%s268 + $0x28] sm:$0xff]
        %v308 = vld [vmem:[%s268 + $0x30] sm:$0xff]
        %v309 = vld [vmem:[%s268 + $0x38] sm:$0xff]
        %v310 = vld [vmem:[%s268 + $0x40] sm:$0xff]
        %v311 = vld [vmem:[%s268 + $0x48] sm:$0xff]
        %v312 = vld [vmem:[%s268 + $0x50] sm:$0xff]
        %v313 = vld [vmem:[%s268 + $0x58] sm:$0xff]
        %v314 = vld [vmem:[%s268 + $0x60] sm:$0xff]
        %v315 = vld [vmem:[%s268 + $0x68] sm:$0xff]
        %v316 = vld [vmem:[%s268 + $0x70] sm:$0xff]
        %v317 = vld [vmem:[%s268 + $0x78] sm:$0xff]
        %v318 = vpack.c.bf16 %v310, %v302
        %v319 = vpack.c.bf16 %v311, %v303
        %v320 = vpack.c.bf16 %v312, %v304
        %v321 = vpack.c.bf16 %v313, %v305
        %v322 = vpack.c.bf16 %v314, %v306
        %v323 = vpack.c.bf16 %v315, %v307
        %v324 = vpack.c.bf16 %v316, %v308
        %v325 = vpack.c.bf16 %v317, %v309
        %v326 = vld [vmem:[%s1] sm:$0xf]
        %v327 = vld [vmem:[%s1 + $0x4] sm:$0xf]
        %v328 = vld [vmem:[%s1 + $0x8] sm:$0xf]
        %v329 = vld [vmem:[%s1 + $0xc] sm:$0xf]
        %v330 = vld [vmem:[%s2] sm:$0xff]
        %v331 = vld [vmem:[%s2 + $0x8] sm:$0xff]
        %v332 = vld [vmem:[%s2 + $0x10] sm:$0xff]
        %v333 = vld [vmem:[%s2 + $0x18] sm:$0xff]
        %335 = vset.pattern.permute.xlu0 0
        %336 = vperm.xlu0 %335, %v330
        %v337 = vpop.permute.xlu0 %336
        %340 = vset.pattern.permute.xlu0 0
        %341 = vperm.xlu0 %340, %v331
        %v342 = vpop.permute.xlu0 %341
        %345 = vset.pattern.permute.xlu0 0
        %346 = vperm.xlu0 %345, %v332
        %v347 = vpop.permute.xlu0 %346
        %350 = vset.pattern.permute.xlu0 0
        %351 = vperm.xlu0 %350, %v333
        %v352 = vpop.permute.xlu0 %351
        %v358 = vunpack.c.l.b16 %v326
        %v359 = vunpack.c.l.b16 %v327
        %v360 = vunpack.c.l.b16 %v328
        %v361 = vunpack.c.l.b16 %v329
        %v362 = vpack.c.b16 %v359, %v358
        %v363 = vpack.c.b16 %v361, %v360
        %vm364 = vcmask 130048
        %v366 = vsel %vm364, %v362, 0
        %v369 = vsel %vm364, %v363, 0
        %371 = vmatprep.subr.bf16.mxu0 %v319
        %372 = vmatpush1.bf16.msra.mxu0 %v318
        %373 = vmatprep.subr.bf16.mxu0 0
        %374 = vmatpush1.bf16.msra.mxu0 0
        %375 = vmatprep.subr.bf16.mxu0 0
        %376 = vmatpush1.bf16.msra.mxu0 0
        %377 = vmatprep.subr.bf16.mxu0 0
        %378 = vmatpush1.bf16.msra.mxu0 0
        %379 = vmatprep.subr.bf16.mxu0 0
        %380 = vmatpush1.bf16.msra.mxu0 0
        %381 = vmatprep.subr.bf16.mxu0 0
        %382 = vmatpush1.bf16.msra.mxu0 0
        %383 = vmatprep.subr.bf16.mxu0 0
        %384 = vmatpush1.bf16.msra.mxu0 0
        %385 = vmatprep.subr.bf16.mxu0 0
        %386 = vmatpush1.bf16.msra.mxu0 0
        %387 = vmatprep.subr.bf16.mxu0 0
        %388 = vmatpush1.bf16.msra.mxu0 0
        %389 = vmatprep.subr.bf16.mxu0 0
        %390 = vmatpush1.bf16.msra.mxu0 0
        %391 = vmatprep.subr.bf16.mxu0 0
        %392 = vmatpush1.bf16.msra.mxu0 0
        %393 = vmatprep.subr.bf16.mxu0 0
        %394 = vmatpush1.bf16.msra.mxu0 0
        %395 = vmatprep.subr.bf16.mxu0 0
        %396 = vmatpush1.bf16.msra.mxu0 0
        %397 = vmatprep.subr.bf16.mxu0 0
        %398 = vmatpush1.bf16.msra.mxu0 0
        %399 = vmatprep.subr.bf16.mxu0 0
        %400 = vmatpush1.bf16.msra.mxu0 0
        %401 = vmatprep.subr.bf16.mxu0 0
        %402 = vmatpush1.bf16.msra.mxu0 0
        %403 = vmatprep.mubr.bf16.mxu0 0
        %404 = vmatmul.mubr.bf16.gmra.mrb[0].mxu0 %v366
        %v405 = vpop.f32.mrb[0].mxu0
        %v406 = vadd.f32 %v337, %v405
        %v407 = vpop.f32.mrb[0].mxu0
        %v408 = vadd.f32 %v337, %v407
        %v409 = vpop.f32.mrb[0].mxu0
        %v410 = vadd.f32 %v342, %v409
        %v411 = vpop.f32.mrb[0].mxu0
        %v412 = vadd.f32 %v342, %v411
        %413 = vmatprep.mubr.bf16.mxu0 0
        %414 = vmatmul.mubr.bf16.gmra.mrb[0].mxu0 %v369
        %v415 = vpop.f32.mrb[0].mxu0
        %v416 = vadd.f32 %v347, %v415
        %v417 = vpop.f32.mrb[0].mxu0
        %v418 = vadd.f32 %v347, %v417
        %v419 = vpop.f32.mrb[0].mxu0
        %v420 = vadd.f32 %v352, %v419
        %v421 = vpop.f32.mrb[0].mxu0
        %v422 = vadd.f32 %v352, %v421
        %423 = vdwg.mxu0
        %424 = vmatprep.subr.bf16.mxu0 %v321
        %425 = vmatpush1.bf16.msra.mxu0 %v320
        %426 = vmatprep.subr.bf16.mxu0 0
        %427 = vmatpush1.bf16.msra.mxu0 0
        %428 = vmatprep.subr.bf16.mxu0 0
        %429 = vmatpush1.bf16.msra.mxu0 0
        %430 = vmatprep.subr.bf16.mxu0 0
        %431 = vmatpush1.bf16.msra.mxu0 0
        %432 = vmatprep.subr.bf16.mxu0 0
        %433 = vmatpush1.bf16.msra.mxu0 0
        %434 = vmatprep.subr.bf16.mxu0 0
        %435 = vmatpush1.bf16.msra.mxu0 0
        %436 = vmatprep.subr.bf16.mxu0 0
        %437 = vmatpush1.bf16.msra.mxu0 0
        %438 = vmatprep.subr.bf16.mxu0 0
        %439 = vmatpush1.bf16.msra.mxu0 0
        %440 = vmatprep.subr.bf16.mxu0 0
        %441 = vmatpush1.bf16.msra.mxu0 0
        %442 = vmatprep.subr.bf16.mxu0 0
        %443 = vmatpush1.bf16.msra.mxu0 0
        %444 = vmatprep.subr.bf16.mxu0 0
        %445 = vmatpush1.bf16.msra.mxu0 0
        %446 = vmatprep.subr.bf16.mxu0 0
        %447 = vmatpush1.bf16.msra.mxu0 0
        %448 = vmatprep.subr.bf16.mxu0 0
        %449 = vmatpush1.bf16.msra.mxu0 0
        %450 = vmatprep.subr.bf16.mxu0 0
        %451 = vmatpush1.bf16.msra.mxu0 0
        %452 = vmatprep.subr.bf16.mxu0 0
        %453 = vmatpush1.bf16.msra.mxu0 0
        %454 = vmatprep.subr.bf16.mxu0 0
        %455 = vmatpush1.bf16.msra.mxu0 0
        %456 = vmatprep.mubr.bf16.mxu0 0
        %457 = vmatmul.mubr.bf16.gmra.mrb[0].mxu0 %v366
        %v458 = vpop.f32.mrb[0].mxu0
        %v459 = vadd.f32 %v337, %v458
        %v460 = vpop.f32.mrb[0].mxu0
        %v461 = vadd.f32 %v337, %v460
        %v462 = vpop.f32.mrb[0].mxu0
        %v463 = vadd.f32 %v342, %v462
        %v464 = vpop.f32.mrb[0].mxu0
        %v465 = vadd.f32 %v342, %v464
        %466 = vmatprep.mubr.bf16.mxu0 0
        %467 = vmatmul.mubr.bf16.gmra.mrb[0].mxu0 %v369
        %v468 = vpop.f32.mrb[0].mxu0
        %v469 = vadd.f32 %v347, %v468
        %v470 = vpop.f32.mrb[0].mxu0
        %v471 = vadd.f32 %v347, %v470
        %v472 = vpop.f32.mrb[0].mxu0
        %v473 = vadd.f32 %v352, %v472
        %v474 = vpop.f32.mrb[0].mxu0
        %v475 = vadd.f32 %v352, %v474
        %476 = vdwg.mxu0
        %477 = vmatprep.subr.bf16.mxu0 %v323
        %478 = vmatpush1.bf16.msra.mxu0 %v322
        %479 = vmatprep.subr.bf16.mxu0 0
        %480 = vmatpush1.bf16.msra.mxu0 0
        %481 = vmatprep.subr.bf16.mxu0 0
        %482 = vmatpush1.bf16.msra.mxu0 0
        %483 = vmatprep.subr.bf16.mxu0 0
        %484 = vmatpush1.bf16.msra.mxu0 0
        %485 = vmatprep.subr.bf16.mxu0 0
        %486 = vmatpush1.bf16.msra.mxu0 0
        %487 = vmatprep.subr.bf16.mxu0 0
        %488 = vmatpush1.bf16.msra.mxu0 0
        %489 = vmatprep.subr.bf16.mxu0 0
        %490 = vmatpush1.bf16.msra.mxu0 0
        %491 = vmatprep.subr.bf16.mxu0 0
        %492 = vmatpush1.bf16.msra.mxu0 0
        %493 = vmatprep.subr.bf16.mxu0 0
        %494 = vmatpush1.bf16.msra.mxu0 0
        %495 = vmatprep.subr.bf16.mxu0 0
        %496 = vmatpush1.bf16.msra.mxu0 0
        %497 = vmatprep.subr.bf16.mxu0 0
        %498 = vmatpush1.bf16.msra.mxu0 0
        %499 = vmatprep.subr.bf16.mxu0 0
        %500 = vmatpush1.bf16.msra.mxu0 0
        %501 = vmatprep.subr.bf16.mxu0 0
        %502 = vmatpush1.bf16.msra.mxu0 0
        %503 = vmatprep.subr.bf16.mxu0 0
        %504 = vmatpush1.bf16.msra.mxu0 0
        %505 = vmatprep.subr.bf16.mxu0 0
        %506 = vmatpush1.bf16.msra.mxu0 0
        %507 = vmatprep.subr.bf16.mxu0 0
        %508 = vmatpush1.bf16.msra.mxu0 0
        %509 = vmatprep.mubr.bf16.mxu0 0
        %510 = vmatmul.mubr.bf16.gmra.mrb[0].mxu0 %v366
        %v511 = vpop.f32.mrb[0].mxu0
        %v512 = vadd.f32 %v337, %v511
        %v513 = vpop.f32.mrb[0].mxu0
        %v514 = vadd.f32 %v337, %v513
        %v515 = vpop.f32.mrb[0].mxu0
        %v516 = vadd.f32 %v342, %v515
        %v517 = vpop.f32.mrb[0].mxu0
        %v518 = vadd.f32 %v342, %v517
        %519 = vmatprep.mubr.bf16.mxu0 0
        %520 = vmatmul.mubr.bf16.gmra.mrb[0].mxu0 %v369
        %v521 = vpop.f32.mrb[0].mxu0
        %v522 = vadd.f32 %v347, %v521
        %v523 = vpop.f32.mrb[0].mxu0
        %v524 = vadd.f32 %v347, %v523
        %v525 = vpop.f32.mrb[0].mxu0
        %v526 = vadd.f32 %v352, %v525
        %v527 = vpop.f32.mrb[0].mxu0
        %v528 = vadd.f32 %v352, %v527
        %529 = vdwg.mxu0
        %530 = vmatprep.subr.bf16.mxu0 %v325
        %531 = vmatpush1.bf16.msra.mxu0 %v324
        %532 = vmatprep.subr.bf16.mxu0 0
        %533 = vmatpush1.bf16.msra.mxu0 0
        %534 = vmatprep.subr.bf16.mxu0 0
        %535 = vmatpush1.bf16.msra.mxu0 0
        %536 = vmatprep.subr.bf16.mxu0 0
        %537 = vmatpush1.bf16.msra.mxu0 0
        %538 = vmatprep.subr.bf16.mxu0 0
        %539 = vmatpush1.bf16.msra.mxu0 0
        %540 = vmatprep.subr.bf16.mxu0 0
        %541 = vmatpush1.bf16.msra.mxu0 0
        %542 = vmatprep.subr.bf16.mxu0 0
        %543 = vmatpush1.bf16.msra.mxu0 0
        %544 = vmatprep.subr.bf16.mxu0 0
        %545 = vmatpush1.bf16.msra.mxu0 0
        %546 = vmatprep.subr.bf16.mxu0 0
        %547 = vmatpush1.bf16.msra.mxu0 0
        %548 = vmatprep.subr.bf16.mxu0 0
        %549 = vmatpush1.bf16.msra.mxu0 0
        %550 = vmatprep.subr.bf16.mxu0 0
        %551 = vmatpush1.bf16.msra.mxu0 0
        %552 = vmatprep.subr.bf16.mxu0 0
        %553 = vmatpush1.bf16.msra.mxu0 0
        %554 = vmatprep.subr.bf16.mxu0 0
        %555 = vmatpush1.bf16.msra.mxu0 0
        %556 = vmatprep.subr.bf16.mxu0 0
        %557 = vmatpush1.bf16.msra.mxu0 0
        %558 = vmatprep.subr.bf16.mxu0 0
        %559 = vmatpush1.bf16.msra.mxu0 0
        %560 = vmatprep.subr.bf16.mxu0 0
        %561 = vmatpush1.bf16.msra.mxu0 0
        %562 = vmatprep.mubr.bf16.mxu0 0
        %563 = vmatmul.mubr.bf16.gmra.mrb[0].mxu0 %v366
        %v564 = vpop.f32.mrb[0].mxu0
        %v565 = vadd.f32 %v337, %v564
        %v566 = vpop.f32.mrb[0].mxu0
        %v567 = vadd.f32 %v337, %v566
        %v568 = vpop.f32.mrb[0].mxu0
        %v569 = vadd.f32 %v342, %v568
        %v570 = vpop.f32.mrb[0].mxu0
        %v571 = vadd.f32 %v342, %v570
        %572 = vmatprep.mubr.bf16.mxu0 0
        %573 = vmatmul.mubr.bf16.gmra.mrb[0].mxu0 %v369
        %v574 = vpop.f32.mrb[0].mxu0
        %v575 = vadd.f32 %v347, %v574
        %v576 = vpop.f32.mrb[0].mxu0
        %v577 = vadd.f32 %v347, %v576
        %v578 = vpop.f32.mrb[0].mxu0
        %v579 = vadd.f32 %v352, %v578
        %v580 = vpop.f32.mrb[0].mxu0
        %v581 = vadd.f32 %v352, %v580
        %582 = vdwg.mxu0
        %v583 = vmax.f32 %v406, 0.0
        %v584 = vmax.f32 %v408, 0.0
        %v585 = vmax.f32 %v459, 0.0
        %v586 = vmax.f32 %v461, 0.0
        %v587 = vmax.f32 %v512, 0.0
        %v588 = vmax.f32 %v514, 0.0
        %v589 = vmax.f32 %v565, 0.0
        %v590 = vmax.f32 %v567, 0.0
        %v591 = vmax.f32 %v410, 0.0
        %v592 = vmax.f32 %v412, 0.0
        %v593 = vmax.f32 %v463, 0.0
        %v594 = vmax.f32 %v465, 0.0
        %v595 = vmax.f32 %v516, 0.0
        %v596 = vmax.f32 %v518, 0.0
        %v597 = vmax.f32 %v569, 0.0
        %v598 = vmax.f32 %v571, 0.0
        %v599 = vmax.f32 %v416, 0.0
        %v600 = vmax.f32 %v418, 0.0
        %v601 = vmax.f32 %v469, 0.0
        %v602 = vmax.f32 %v471, 0.0
        %v603 = vmax.f32 %v522, 0.0
        %v604 = vmax.f32 %v524, 0.0
        %v605 = vmax.f32 %v575, 0.0
        %v606 = vmax.f32 %v577, 0.0
        %v607 = vmax.f32 %v420, 0.0
        %v608 = vmax.f32 %v422, 0.0
        %v609 = vmax.f32 %v473, 0.0
        %v610 = vmax.f32 %v475, 0.0
        %v611 = vmax.f32 %v526, 0.0
        %v612 = vmax.f32 %v528, 0.0
        %v613 = vmax.f32 %v579, 0.0
        %v614 = vmax.f32 %v581, 0.0
        %v615 = vld [vmem:[%s3] sm:$0xf]
        %v616 = vld [vmem:[%s3 + $0x4] sm:$0xf]
        %v617 = vpack.c.bf16 %v591, %v583
        %v618 = vpack.c.bf16 %v592, %v584
        %v619 = vpack.c.bf16 %v593, %v585
        %v620 = vpack.c.bf16 %v594, %v586
        %v621 = vpack.c.bf16 %v595, %v587
        %v622 = vpack.c.bf16 %v596, %v588
        %v623 = vpack.c.bf16 %v597, %v589
        %v624 = vpack.c.bf16 %v598, %v590
        %v625 = vpack.c.bf16 %v607, %v599
        %v626 = vpack.c.bf16 %v608, %v600
        %v627 = vpack.c.bf16 %v609, %v601
        %v628 = vpack.c.bf16 %v610, %v602
        %v629 = vpack.c.bf16 %v611, %v603
        %v630 = vpack.c.bf16 %v612, %v604
        %v631 = vpack.c.bf16 %v613, %v605
        %v632 = vpack.c.bf16 %v614, %v606
        %v633 = vld [vmem:[%s4] sm:$0xff]
        %v634 = vld [vmem:[%s4 + $0x8] sm:$0xff]
        %636 = vset.pattern.permute.xlu0 0
        %637 = vperm.xlu0 %636, %v633
        %v638 = vpop.permute.xlu0 %637
        %641 = vset.pattern.permute.xlu0 0
        %642 = vperm.xlu0 %641, %v634
        %v643 = vpop.permute.xlu0 %642
        %v647 = vunpack.c.l.b16 %v615
        %v648 = vunpack.c.l.b16 %v616
        %v649 = vpack.c.b16 %v648, %v647
        %vm650 = vcmask 261120
        %v652 = vsel %vm650, %v649, 0
        %654 = vmatprep.subr.bf16.mxu0 %v618
        %655 = vmatpush1.bf16.msra.mxu0 %v617
        %656 = vmatprep.subr.bf16.mxu0 %v626
        %657 = vmatpush1.bf16.msra.mxu0 %v625
        %658 = vmatprep.subr.bf16.mxu0 0
        %659 = vmatpush1.bf16.msra.mxu0 0
        %660 = vmatprep.subr.bf16.mxu0 0
        %661 = vmatpush1.bf16.msra.mxu0 0
        %662 = vmatprep.subr.bf16.mxu0 0
        %663 = vmatpush1.bf16.msra.mxu0 0
        %664 = vmatprep.subr.bf16.mxu0 0
        %665 = vmatpush1.bf16.msra.mxu0 0
        %666 = vmatprep.subr.bf16.mxu0 0
        %667 = vmatpush1.bf16.msra.mxu0 0
        %668 = vmatprep.subr.bf16.mxu0 0
        %669 = vmatpush1.bf16.msra.mxu0 0
        %670 = vmatprep.subr.bf16.mxu0 0
        %671 = vmatpush1.bf16.msra.mxu0 0
        %672 = vmatprep.subr.bf16.mxu0 0
        %673 = vmatpush1.bf16.msra.mxu0 0
        %674 = vmatprep.subr.bf16.mxu0 0
        %675 = vmatpush1.bf16.msra.mxu0 0
        %676 = vmatprep.subr.bf16.mxu0 0
        %677 = vmatpush1.bf16.msra.mxu0 0
        %678 = vmatprep.subr.bf16.mxu0 0
        %679 = vmatpush1.bf16.msra.mxu0 0
        %680 = vmatprep.subr.bf16.mxu0 0
        %681 = vmatpush1.bf16.msra.mxu0 0
        %682 = vmatprep.subr.bf16.mxu0 0
        %683 = vmatpush1.bf16.msra.mxu0 0
        %684 = vmatprep.subr.bf16.mxu0 0
        %685 = vmatpush1.bf16.msra.mxu0 0
        %686 = vmatprep.mubr.bf16.mxu0 0
        %687 = vmatmul.mubr.bf16.gmra.mrb[0].mxu0 %v652
        %v688 = vpop.f32.mrb[0].mxu0
        %v689 = vadd.f32 %v638, %v688
        %v690 = vpop.f32.mrb[0].mxu0
        %v691 = vadd.f32 %v638, %v690
        %v692 = vpop.f32.mrb[0].mxu0
        %v693 = vadd.f32 %v643, %v692
        %v694 = vpop.f32.mrb[0].mxu0
        %v695 = vadd.f32 %v643, %v694
        %696 = vdwg.mxu0
        %697 = vmatprep.subr.bf16.mxu0 %v620
        %698 = vmatpush1.bf16.msra.mxu0 %v619
        %699 = vmatprep.subr.bf16.mxu0 %v628
        %700 = vmatpush1.bf16.msra.mxu0 %v627
        %701 = vmatprep.subr.bf16.mxu0 0
        %702 = vmatpush1.bf16.msra.mxu0 0
        %703 = vmatprep.subr.bf16.mxu0 0
        %704 = vmatpush1.bf16.msra.mxu0 0
        %705 = vmatprep.subr.bf16.mxu0 0
        %706 = vmatpush1.bf16.msra.mxu0 0
        %707 = vmatprep.subr.bf16.mxu0 0
        %708 = vmatpush1.bf16.msra.mxu0 0
        %709 = vmatprep.subr.bf16.mxu0 0
        %710 = vmatpush1.bf16.msra.mxu0 0
        %711 = vmatprep.subr.bf16.mxu0 0
        %712 = vmatpush1.bf16.msra.mxu0 0
        %713 = vmatprep.subr.bf16.mxu0 0
        %714 = vmatpush1.bf16.msra.mxu0 0
        %715 = vmatprep.subr.bf16.mxu0 0
        %716 = vmatpush1.bf16.msra.mxu0 0
        %717 = vmatprep.subr.bf16.mxu0 0
        %718 = vmatpush1.bf16.msra.mxu0 0
        %719 = vmatprep.subr.bf16.mxu0 0
        %720 = vmatpush1.bf16.msra.mxu0 0
        %721 = vmatprep.subr.bf16.mxu0 0
        %722 = vmatpush1.bf16.msra.mxu0 0
        %723 = vmatprep.subr.bf16.mxu0 0
        %724 = vmatpush1.bf16.msra.mxu0 0
        %725 = vmatprep.subr.bf16.mxu0 0
        %726 = vmatpush1.bf16.msra.mxu0 0
        %727 = vmatprep.subr.bf16.mxu0 0
        %728 = vmatpush1.bf16.msra.mxu0 0
        %729 = vmatprep.mubr.bf16.mxu0 0
        %730 = vmatmul.mubr.bf16.gmra.mrb[0].mxu0 %v652
        %v731 = vpop.f32.mrb[0].mxu0
        %v732 = vadd.f32 %v638, %v731
        %v733 = vpop.f32.mrb[0].mxu0
        %v734 = vadd.f32 %v638, %v733
        %v735 = vpop.f32.mrb[0].mxu0
        %v736 = vadd.f32 %v643, %v735
        %v737 = vpop.f32.mrb[0].mxu0
        %v738 = vadd.f32 %v643, %v737
        %739 = vdwg.mxu0
        %740 = vmatprep.subr.bf16.mxu0 %v622
        %741 = vmatpush1.bf16.msra.mxu0 %v621
        %742 = vmatprep.subr.bf16.mxu0 %v630
        %743 = vmatpush1.bf16.msra.mxu0 %v629
        %744 = vmatprep.subr.bf16.mxu0 0
        %745 = vmatpush1.bf16.msra.mxu0 0
        %746 = vmatprep.subr.bf16.mxu0 0
        %747 = vmatpush1.bf16.msra.mxu0 0
        %748 = vmatprep.subr.bf16.mxu0 0
        %749 = vmatpush1.bf16.msra.mxu0 0
        %750 = vmatprep.subr.bf16.mxu0 0
        %751 = vmatpush1.bf16.msra.mxu0 0
        %752 = vmatprep.subr.bf16.mxu0 0
        %753 = vmatpush1.bf16.msra.mxu0 0
        %754 = vmatprep.subr.bf16.mxu0 0
        %755 = vmatpush1.bf16.msra.mxu0 0
        %756 = vmatprep.subr.bf16.mxu0 0
        %757 = vmatpush1.bf16.msra.mxu0 0
        %758 = vmatprep.subr.bf16.mxu0 0
        %759 = vmatpush1.bf16.msra.mxu0 0
        %760 = vmatprep.subr.bf16.mxu0 0
        %761 = vmatpush1.bf16.msra.mxu0 0
        %762 = vmatprep.subr.bf16.mxu0 0
        %763 = vmatpush1.bf16.msra.mxu0 0
        %764 = vmatprep.subr.bf16.mxu0 0
        %765 = vmatpush1.bf16.msra.mxu0 0
        %766 = vmatprep.subr.bf16.mxu0 0
        %767 = vmatpush1.bf16.msra.mxu0 0
        %768 = vmatprep.subr.bf16.mxu0 0
        %769 = vmatpush1.bf16.msra.mxu0 0
        %770 = vmatprep.subr.bf16.mxu0 0
        %771 = vmatpush1.bf16.msra.mxu0 0
        %772 = vmatprep.mubr.bf16.mxu0 0
        %773 = vmatmul.mubr.bf16.gmra.mrb[0].mxu0 %v652
        %v774 = vpop.f32.mrb[0].mxu0
        %v775 = vadd.f32 %v638, %v774
        %v776 = vpop.f32.mrb[0].mxu0
        %v777 = vadd.f32 %v638, %v776
        %v778 = vpop.f32.mrb[0].mxu0
        %v779 = vadd.f32 %v643, %v778
        %v780 = vpop.f32.mrb[0].mxu0
        %v781 = vadd.f32 %v643, %v780
        %782 = vdwg.mxu0
        %783 = vmatprep.subr.bf16.mxu0 %v624
        %784 = vmatpush1.bf16.msra.mxu0 %v623
        %785 = vmatprep.subr.bf16.mxu0 %v632
        %786 = vmatpush1.bf16.msra.mxu0 %v631
        %787 = vmatprep.subr.bf16.mxu0 0
        %788 = vmatpush1.bf16.msra.mxu0 0
        %789 = vmatprep.subr.bf16.mxu0 0
        %790 = vmatpush1.bf16.msra.mxu0 0
        %791 = vmatprep.subr.bf16.mxu0 0
        %792 = vmatpush1.bf16.msra.mxu0 0
        %793 = vmatprep.subr.bf16.mxu0 0
        %794 = vmatpush1.bf16.msra.mxu0 0
        %795 = vmatprep.subr.bf16.mxu0 0
        %796 = vmatpush1.bf16.msra.mxu0 0
        %797 = vmatprep.subr.bf16.mxu0 0
        %798 = vmatpush1.bf16.msra.mxu0 0
        %799 = vmatprep.subr.bf16.mxu0 0
        %800 = vmatpush1.bf16.msra.mxu0 0
        %801 = vmatprep.subr.bf16.mxu0 0
        %802 = vmatpush1.bf16.msra.mxu0 0
        %803 = vmatprep.subr.bf16.mxu0 0
        %804 = vmatpush1.bf16.msra.mxu0 0
        %805 = vmatprep.subr.bf16.mxu0 0
        %806 = vmatpush1.bf16.msra.mxu0 0
        %807 = vmatprep.subr.bf16.mxu0 0
        %808 = vmatpush1.bf16.msra.mxu0 0
        %809 = vmatprep.subr.bf16.mxu0 0
        %810 = vmatpush1.bf16.msra.mxu0 0
        %811 = vmatprep.subr.bf16.mxu0 0
        %812 = vmatpush1.bf16.msra.mxu0 0
        %813 = vmatprep.subr.bf16.mxu0 0
        %814 = vmatpush1.bf16.msra.mxu0 0
        %815 = vmatprep.mubr.bf16.mxu0 0
        %816 = vmatmul.mubr.bf16.gmra.mrb[0].mxu0 %v652
        %v817 = vpop.f32.mrb[0].mxu0
        %v818 = vadd.f32 %v638, %v817
        %v819 = vpop.f32.mrb[0].mxu0
        %v820 = vadd.f32 %v638, %v819
        %v821 = vpop.f32.mrb[0].mxu0
        %v822 = vadd.f32 %v643, %v821
        %v823 = vpop.f32.mrb[0].mxu0
        %v824 = vadd.f32 %v643, %v823
        %825 = vdwg.mxu0
        %v826 = vmax.f32 %v689, 0.0
        %v827 = vmax.f32 %v691, 0.0
        %v828 = vmax.f32 %v732, 0.0
        %v829 = vmax.f32 %v734, 0.0
        %v830 = vmax.f32 %v775, 0.0
        %v831 = vmax.f32 %v777, 0.0
        %v832 = vmax.f32 %v818, 0.0
        %v833 = vmax.f32 %v820, 0.0
        %v834 = vmax.f32 %v693, 0.0
        %v835 = vmax.f32 %v695, 0.0
        %v836 = vmax.f32 %v736, 0.0
        %v837 = vmax.f32 %v738, 0.0
        %v838 = vmax.f32 %v779, 0.0
        %v839 = vmax.f32 %v781, 0.0
        %v840 = vmax.f32 %v822, 0.0
        %v841 = vmax.f32 %v824, 0.0
        %v842 = vld [vmem:[%s5] sm:$0xff]
        %v843 = vld [vmem:[%s5 + $0x8] sm:$0xff]
        %845 = vset.pattern.permute.xlu0 0
        %846 = vperm.xlu0 %845, %v842
        %v847 = vpop.permute.xlu0 %846
        %850 = vset.pattern.permute.xlu0 0
        %851 = vperm.xlu0 %850, %v843
        %v852 = vpop.permute.xlu0 %851
        %v854 = vmul.f32 %v847, %v826
        %v855 = vmul.f32 %v847, %v827
        %v856 = vmul.f32 %v847, %v828
        %v857 = vmul.f32 %v847, %v829
        %v858 = vmul.f32 %v847, %v830
        %v859 = vmul.f32 %v847, %v831
        %v860 = vmul.f32 %v847, %v832
        %v861 = vmul.f32 %v847, %v833
        %v862 = vmul.f32 %v852, %v834
        %v863 = vmul.f32 %v852, %v835
        %v864 = vmul.f32 %v852, %v836
        %v865 = vmul.f32 %v852, %v837
        %v866 = vmul.f32 %v852, %v838
        %v867 = vmul.f32 %v852, %v839
        %v868 = vmul.f32 %v852, %v840
        %v869 = vmul.f32 %v852, %v841
        %v870 = vadd.f32 %v854, %v862
        %v871 = vrot.slane %v870, 4
        %v872 = vadd.f32 %v870, %v871
        %v873 = vrot.slane %v872, 2
        %v874 = vadd.f32 %v872, %v873
        %v875 = vrot.slane %v874, 1
        %v876 = vadd.f32 %v874, %v875
        %v877 = vadd.f32 %v855, %v863
        %v878 = vrot.slane %v877, 4
        %v879 = vadd.f32 %v877, %v878
        %v880 = vrot.slane %v879, 2
        %v881 = vadd.f32 %v879, %v880
        %v882 = vrot.slane %v881, 1
        %v883 = vadd.f32 %v881, %v882
        %v884 = vadd.f32 %v856, %v864
        %v885 = vrot.slane %v884, 4
        %v886 = vadd.f32 %v884, %v885
        %v887 = vrot.slane %v886, 2
        %v888 = vadd.f32 %v886, %v887
        %v889 = vrot.slane %v888, 1
        %v890 = vadd.f32 %v888, %v889
        %v891 = vadd.f32 %v857, %v865
        %v892 = vrot.slane %v891, 4
        %v893 = vadd.f32 %v891, %v892
        %v894 = vrot.slane %v893, 2
        %v895 = vadd.f32 %v893, %v894
        %v896 = vrot.slane %v895, 1
        %v897 = vadd.f32 %v895, %v896
        %v898 = vadd.f32 %v858, %v866
        %v899 = vrot.slane %v898, 4
        %v900 = vadd.f32 %v898, %v899
        %v901 = vrot.slane %v900, 2
        %v902 = vadd.f32 %v900, %v901
        %v903 = vrot.slane %v902, 1
        %v904 = vadd.f32 %v902, %v903
        %v905 = vadd.f32 %v859, %v867
        %v906 = vrot.slane %v905, 4
        %v907 = vadd.f32 %v905, %v906
        %v908 = vrot.slane %v907, 2
        %v909 = vadd.f32 %v907, %v908
        %v910 = vrot.slane %v909, 1
        %v911 = vadd.f32 %v909, %v910
        %v912 = vadd.f32 %v860, %v868
        %v913 = vrot.slane %v912, 4
        %v914 = vadd.f32 %v912, %v913
        %v915 = vrot.slane %v914, 2
        %v916 = vadd.f32 %v914, %v915
        %v917 = vrot.slane %v916, 1
        %v918 = vadd.f32 %v916, %v917
        %v919 = vadd.f32 %v861, %v869
        %v920 = vrot.slane %v919, 4
        %v921 = vadd.f32 %v919, %v920
        %v922 = vrot.slane %v921, 2
        %v923 = vadd.f32 %v921, %v922
        %v924 = vrot.slane %v923, 1
        %v925 = vadd.f32 %v923, %v924
        %v926 = vld [vmem:[#allocation2] sm:$0x1]
        %928 = vset.pattern.permute.xlu0 0
        %929 = vperm.xlu0 %928, %v926
        %v930 = vpop.permute.xlu0 %929
        %v932 = vlaneseq
        %v933 = vshrl.u32 %v932, 7
        %v934 = vsub.s32 0, %v933
        %v935 = vrot.slane %v930, %v934
        %v936 = vadd.f32 %v876, %v935
        %v937 = vadd.f32 %v883, %v935
        %v938 = vadd.f32 %v890, %v935
        %v939 = vadd.f32 %v897, %v935
        %v940 = vadd.f32 %v904, %v935
        %v941 = vadd.f32 %v911, %v935
        %v942 = vadd.f32 %v918, %v935
        %v943 = vadd.f32 %v925, %v935
        %v944 = vxor.u32 %v936, 2147483648
        %v945 = vxor.u32 %v937, 2147483648
        %v946 = vxor.u32 %v938, 2147483648
        %v947 = vxor.u32 %v939, 2147483648
        %v948 = vxor.u32 %v940, 2147483648
        %v949 = vxor.u32 %v941, 2147483648
        %v950 = vxor.u32 %v942, 2147483648
        %v951 = vxor.u32 %v943, 2147483648
        %v952 = vmul.f32 %v944, 1.442695
        %v953 = vpow.pop %v952
        %v954 = vmul.f32 %v945, 1.442695
        %v955 = vpow.pop %v954
        %v956 = vmul.f32 %v946, 1.442695
        %v957 = vpow.pop %v956
        %v958 = vmul.f32 %v947, 1.442695
        %v959 = vpow.pop %v958
        %v960 = vmul.f32 %v948, 1.442695
        %v961 = vpow.pop %v960
        %v962 = vmul.f32 %v949, 1.442695
        %v963 = vpow.pop %v962
        %v964 = vmul.f32 %v950, 1.442695
        %v965 = vpow.pop %v964
        %v966 = vmul.f32 %v951, 1.442695
        %v967 = vpow.pop %v966
        %v968 = vadd.f32 %v953, 1.0
        %v969 = vadd.f32 %v955, 1.0
        %v970 = vadd.f32 %v957, 1.0
        %v971 = vadd.f32 %v959, 1.0
        %v972 = vadd.f32 %v961, 1.0
        %v973 = vadd.f32 %v963, 1.0
        %v974 = vadd.f32 %v965, 1.0
        %v975 = vadd.f32 %v967, 1.0
        %v976 = vrcp.pop %v968
        %v977 = vmul.f32 1.0, %v976
        %v978 = vrcp.pop %v969
        %v979 = vmul.f32 1.0, %v978
        %v980 = vrcp.pop %v970
        %v981 = vmul.f32 1.0, %v980
        %v982 = vrcp.pop %v971
        %v983 = vmul.f32 1.0, %v982
        %v984 = vrcp.pop %v972
        %v985 = vmul.f32 1.0, %v984
        %v986 = vrcp.pop %v973
        %v987 = vmul.f32 1.0, %v986
        %v988 = vrcp.pop %v974
        %v989 = vmul.f32 1.0, %v988
        %v990 = vrcp.pop %v975
        %v991 = vmul.f32 1.0, %v990
        %v1000 = vcombine.low %v977, %v979
        %v1001 = vcombine.low %v981, %v983
        %v1002 = vcombine.low %v985, %v987
        %v1003 = vcombine.low %v989, %v991
        %v1005 = vunpack.c.l.s4 1966171168
        %v1006 = vunpack.c.0.s8 %v1005
        %v1007 = vlaneseq
        %v1008 = vshrl.u32 %v1007, 7
        %v1009 = vsub.s32 %v1006, %v1008
        %v1010 = vrot.slane %v1000, %v1009
        %v1012 = vunpack.c.l.s4 1966171168
        %v1013 = vunpack.c.0.s8 %v1012
        %v1014 = vlaneseq
        %v1015 = vshrl.u32 %v1014, 7
        %v1016 = vsub.s32 %v1013, %v1015
        %v1017 = vrot.slane %v1001, %v1016
        %v1019 = vunpack.c.l.s4 1966171168
        %v1020 = vunpack.c.0.s8 %v1019
        %v1021 = vlaneseq
        %v1022 = vshrl.u32 %v1021, 7
        %v1023 = vsub.s32 %v1020, %v1022
        %v1024 = vrot.slane %v1002, %v1023
        %v1026 = vunpack.c.l.s4 1966171168
        %v1027 = vunpack.c.0.s8 %v1026
        %v1028 = vlaneseq
        %v1029 = vshrl.u32 %v1028, 7
        %v1030 = vsub.s32 %v1027, %v1029
        %v1031 = vrot.slane %v1003, %v1030
        %v1032 = vcombine.low %v1010, %v1017
        %v1033 = vcombine.low %v1024, %v1031
        %v1035 = vunpack.c.l.s4 1966171168
        %v1036 = vunpack.c.0.s8 %v1035
        %v1037 = vlaneseq
        %v1038 = vshrl.u32 %v1037, 7
        %v1039 = vsub.s32 %v1036, %v1038
        %v1040 = vrot.slane %v1032, %v1039
        %v1042 = vunpack.c.l.s4 1966171168
        %v1043 = vunpack.c.0.s8 %v1042
        %v1044 = vlaneseq
        %v1045 = vshrl.u32 %v1044, 7
        %v1046 = vsub.s32 %v1043, %v1045
        %v1047 = vrot.slane %v1033, %v1046
        %v1048 = vcombine.low %v1040, %v1047
        %1050 = vst [vmem:[%s298] sm:$0xff] %v1048
        %s1051 = sand.u32 %s186, 1
        %s1052 = scalar_lea.sflag [#allocation5], %s1051
        %s1053 = sand.u32 %s186, 1
        %s1054 = smul.addr %s1053, 8
        %s1055 = scalar_lea.vmem [#allocation6], %s1054
        // Predicated region
        $region53: #{tpu_custom_call.1} parent=47 // pred_check
          %p1056 = pneg %p196
        $region54: #{tpu_custom_call.1} parent=47 // pred_check_branch
          %1058 = sbr.rel (%p1056) target = $region56
        $region55: #{tpu_custom_call.1} parent=47 // pred_region
          %s1059 = smul.u32 8, %s26
          %s1061 = ssub.s32 128, 128
          %1062 = vsyncadd %s1052, %s1061
          %s1063 = smul.addr %s1059, 16
          %s1064 = scalar_lea.hbm %s7, %s1063
          %s1066 = sshll.u32 %s1055, 4
          %s1067 = int_to_ptr.vmem [resolvable:$true] %s1066
          %1069 = dma.vmem_to_hbm [thread:$0]  %s1067, 128, %s1064, %s1052
        $region56: #{tpu_custom_call.1} parent=47 // pred_fallthru
          _
      $region48: #{tpu_custom_call.1} parent=5 // pred_fallthru
        _
      %p1070 = scmp.le.s32.totalorder 2, %s21
      // Predicated region
      $region57: #{tpu_custom_call.1} parent=5 // pred_check
        %p1071 = pneg %p1070
      $region58: #{tpu_custom_call.1} parent=5 // pred_check_branch
        %1073 = sbr.rel (%p1071) target = $region60
      $region59: #{tpu_custom_call.1} parent=5 // pred_region
        %s1074 = ssub.s32 %s21, 2
        // Predicated region
        $region61: #{tpu_custom_call.1} parent=59 // pred_check
          %p1075 = pneg %p202
        $region62: #{tpu_custom_call.1} parent=59 // pred_check_branch
          %1077 = sbr.rel (%p1075) target = $region64
        $region63: #{tpu_custom_call.1} parent=59 // pred_region
          %s1078 = sand.u32 %s187, 1
          %s1079 = scalar_lea.sflag [#allocation5], %s1078
          %s1080 = sand.u32 %s187, 1
          %s1081 = smul.addr %s1080, 8
          %s1082 = scalar_lea.vmem [#allocation6], %s1081
          %1083 = dma.done %s1079, 128
        $region64: #{tpu_custom_call.1} parent=59 // pred_fallthru
          _
      $region60: #{tpu_custom_call.1} parent=5 // pred_fallthru
        _
    $region6: #{tpu_custom_call.1} parent=1 // loop_footer
      %s25 = sadd.s32 1, %s21
    $region7: #{tpu_custom_call.1} parent=1 // loop_footer_branch
      %20 = sbr.rel target = $region3
    $region8: #{tpu_custom_call.1} parent=1 // loop_exit
      _
    %1084 = vsyncpa [#allocation4], 1
    %s1085 = scalar_lea.sflag [#allocation4], 1
    %1086 = vsyncpa %s1085, 1
    %1087 = vsyncpa [#allocation5], 1
    %s1088 = scalar_lea.sflag [#allocation5], 1
    %1089 = vsyncpa %s1088, 1

</llo_original>
